<compile_context>
chip_gen: v7x
topology: tpu7x:2x2x1
jax: 0.10.0
libtpu: 0.0.40
codegen_flags: <defaults>
</compile_context>

<pallas_src>
import functools

import jax
import jax.numpy as jnp
from jax.experimental import pallas as pl
from jax.experimental.pallas import tpu as pltpu

CFEAT_PAD = 128   # feature_dim padded to full lane/sublane width
NOUT_PAD = 128    # num_outputs padded to full width
_LANE = 128
_SUB = 8


def _ceil_to(x, m):
    return -(-x // m) * m


def _cmr_kernel(x_ref, wconvT_ref, bconvT_ref, pool_ref, wcombT_ref, bcombT_ref,
                out_ref, *, wp, margin, l_out):
    # x_ref     : (cin, margin + l_out + margin)  lane-flattened padded images
    # wconvT_ref: (CFEAT_PAD, 9*cin)   conv weights, features on sublanes
    # bconvT_ref: (CFEAT_PAD, 1)
    # pool_ref  : (l_out, Nb)          masked + scaled average-pool matrix
    # wcombT_ref: (NOUT_PAD, CFEAT_PAD) fused (fc @ output_layer) weights
    # bcombT_ref: (NOUT_PAD, 1)
    # out_ref   : (NOUT_PAD, Nb)
    tile = x_ref[...]                                        # (cin, l_tile)

    # Build the (9*cin, l_out) patch matrix once: each 3x3 tap is a static
    # lane shift of the flattened padded image; the +/-margin lanes absorb the
    # shifts, so invalid border/pad lanes only ever hold garbage that the
    # pooling matrix zeroes out.
    taps = []
    for dy in range(3):
        for dx in range(3):
            start = margin + (dy - 1) * wp + (dx - 1)
            taps.append(tile[:, start:start + l_out])        # (cin, l_out)
    kmat = jnp.concatenate(taps, axis=0)                     # (9*cin, l_out)

    # conv3x3 + bias + ReLU as a single MXU matmul (K = 9*cin), transposed so
    # the wide flattened-spatial axis stays lane-dense.
    conv = jnp.dot(wconvT_ref[...], kmat,
                   preferred_element_type=jnp.float32)       # (CFEAT_PAD, l_out)
    feat = jnp.maximum(conv + bconvT_ref[...], 0.0)

    # AdaptiveAvgPool2d((1,1)) on the MXU: column b of pool_ref holds 1/(H*W)
    # on image b's valid output lanes and 0 elsewhere.
    pooled = jnp.dot(feat, pool_ref[...],
                     preferred_element_type=jnp.float32)     # (CFEAT_PAD, Nb)

    # fused fc + output_layer (no nonlinearity between them in the module)
    out_ref[...] = (jnp.dot(wcombT_ref[...], pooled,
                            preferred_element_type=jnp.float32)
                    + bcombT_ref[...])                       # (NOUT_PAD, Nb)


def cmr_forward(x_nchw, params, *, images_per_block=None,
                compute_dtype=jnp.float32):
    """Pallas implementation of CMRModel.forward (ResNet50 / 2D path)."""
    wconv, bconv, wfc, bfc, wout, bout = params
    n, cin, h, w = x_nchw.shape
    feature_dim = wconv.shape[1]
    num_outputs = wout.shape[1]
    assert feature_dim <= CFEAT_PAD and num_outputs <= NOUT_PAD

    if images_per_block is None:
        # keep >= 2 grid blocks when possible so v7x's two TensorCores are fed
        images_per_block = n // 2 if (n >= 2 and n % 2 == 0) else 1
    nb = images_per_block
    assert n % nb == 0
    n_blocks = n // nb

    hp, wp = h + 2, w + 2
    p = hp * wp                         # flattened padded-image length
    p_pad = _ceil_to(p, _LANE)          # per-image lane stride (aligned)
    margin = _ceil_to(wp + 1, _LANE)    # absorbs the +/-(wp+1) tap shifts
    l_out = nb * p_pad                  # conv-output lanes per grid step
    l_tile = l_out + 2 * margin

    # --- activations: NCHW -> zero-pad spatial -> flatten (H+2)*(W+2) onto the
    # lane axis (channels on sublanes), nb images per block, +/- margin lanes.
    # One fused XLA relayout pass.
    # TODO(synk): at realistic sizes DMA raw NCHW and build the halo in-kernel
    # to avoid this wrapper-side HBM round trip.
    xp = jnp.pad(x_nchw.astype(jnp.float32), ((0, 0), (0, 0), (1, 1), (1, 1)))
    xp = xp.reshape(n, cin, p)
    xp = jnp.pad(xp, ((0, 0), (0, 0), (0, p_pad - p)))
    xp = xp.reshape(n_blocks, nb, cin, p_pad).transpose(0, 2, 1, 3)
    xp = xp.reshape(n_blocks, cin, l_out)
    xp = jnp.pad(xp, ((0, 0), (0, 0), (margin, margin))).astype(compute_dtype)

    # --- weights: transpose, pad feature/output dims to 128 (zero pad = exact) ---
    wconvT = jnp.zeros((CFEAT_PAD, 9 * cin), jnp.float32
                       ).at[:feature_dim, :].set(wconv.T).astype(compute_dtype)
    bconvT = jnp.zeros((CFEAT_PAD, 1), jnp.float32
                       ).at[:feature_dim, 0].set(bconv.reshape(-1))
    # fuse fc + output_layer:  (p @ wfc + bfc) @ wout + bout = p @ W + b
    wcomb = wfc @ wout
    bcomb = bfc.reshape(1, -1) @ wout + bout.reshape(1, -1)
    wcombT = jnp.zeros((NOUT_PAD, CFEAT_PAD), jnp.float32
                       ).at[:num_outputs, :feature_dim].set(wcomb.T)
    bcombT = jnp.zeros((NOUT_PAD, 1), jnp.float32
                       ).at[:num_outputs, 0].set(bcomb.reshape(-1))

    # --- pooling matrix: column b = 1/(H*W) on image b's valid output lanes ---
    lane = jnp.arange(l_out)
    q = lane % p_pad
    yy, xx = q // wp, q % wp
    valid = (yy >= 1) & (yy <= h) & (xx >= 1) & (xx <= w) & (q < p)
    img = lane // p_pad
    pool = (valid[:, None] & (img[:, None] == jnp.arange(nb)[None, :]))
    pool = pool.astype(jnp.float32) * (1.0 / (h * w))        # (l_out, nb)

    kernel = functools.partial(_cmr_kernel, wp=wp, margin=margin, l_out=l_out)

    # right-sized scoped-VMEM budget from the actual (padded) block sizes
    blocks = [(cin, l_tile), (CFEAT_PAD, 9 * cin), (CFEAT_PAD, 1), (l_out, nb),
              (NOUT_PAD, CFEAT_PAD), (NOUT_PAD, 1), (NOUT_PAD, nb)]
    blk_bytes = sum(_ceil_to(a, _SUB) * _ceil_to(b, _LANE) * 4 for a, b in blocks)
    tmp_bytes = (_ceil_to(9 * cin, _SUB) + 2 * CFEAT_PAD) * _ceil_to(l_out, _LANE) * 4
    vmem_limit = int(max(4 * blk_bytes + 2 * tmp_bytes, 4 * 1024 * 1024))

    out_t = pl.pallas_call(
        kernel,
        out_shape=jax.ShapeDtypeStruct((n_blocks, NOUT_PAD, nb), jnp.float32),
        grid=(n_blocks,),
        in_specs=[
            # per-block activation tile (lane-dense, halo margins included)
            pl.BlockSpec((None, cin, l_tile), lambda i: (i, 0, 0)),
            # weights / biases / pooling matrix: fetched once, resident
            pl.BlockSpec((CFEAT_PAD, 9 * cin), lambda i: (0, 0)),
            pl.BlockSpec((CFEAT_PAD, 1), lambda i: (0, 0)),
            pl.BlockSpec((l_out, nb), lambda i: (0, 0)),
            pl.BlockSpec((NOUT_PAD, CFEAT_PAD), lambda i: (0, 0)),
            pl.BlockSpec((NOUT_PAD, 1), lambda i: (0, 0)),
        ],
        out_specs=pl.BlockSpec((None, NOUT_PAD, nb), lambda i: (i, 0, 0)),
        compiler_params=pltpu.CompilerParams(
            dimension_semantics=("parallel",),
            vmem_limit_bytes=vmem_limit,
        ),
    )(xp, wconvT, bconvT, pool, wcombT, bcombT)

    # (n_blocks, NOUT_PAD, nb) -> (N, num_outputs); the tiny final transpose is
    # wrapper-side XLA (the in-kernel store stays a single (128, nb) tile).
    out = jnp.transpose(out_t, (0, 2, 1)).reshape(n, NOUT_PAD)
    return out[:, :num_outputs]


def reference_forward(x_nchw, params):
    """Pure-JAX reference of the same forward pass (unfused, unpadded)."""
    wconv, bconv, wfc, bfc, wout, bout = params
    n, cin, h, w = x_nchw.shape
    x = jnp.transpose(x_nchw, (0, 2, 3, 1))
    w_hwio = wconv.reshape(3, 3, cin, -1)
    feat = jax.lax.conv_general_dilated(
        x, w_hwio, window_strides=(1, 1), padding="SAME",
        dimension_numbers=("NHWC", "HWIO", "NHWC"))
    feat = jnp.maximum(feat + bconv.reshape(1, 1, 1, -1), 0.0)
    pooled = jnp.mean(feat, axis=(1, 2))
    latent = pooled @ wfc + bfc
    return latent @ wout + bout


def init_params(key, cin, feature_dim, latent_dim, num_outputs):
    ks = jax.random.split(key, 6)
    wconv = 0.1 * jax.random.normal(ks[0], (9 * cin, feature_dim), jnp.float32)
    bconv = 0.1 * jax.random.normal(ks[1], (1, feature_dim), jnp.float32)
    wfc = 0.1 * jax.random.normal(ks[2], (feature_dim, latent_dim), jnp.float32)
    bfc = 0.1 * jax.random.normal(ks[3], (1, latent_dim), jnp.float32)
    wout = 0.1 * jax.random.normal(ks[4], (latent_dim, num_outputs), jnp.float32)
    bout = 0.1 * jax.random.normal(ks[5], (1, num_outputs), jnp.float32)
    return (wconv, bconv, wfc, bfc, wout, bout)


if __name__ == "__main__":
    # Shapes consistent with the module: input_size=2 channels (default),
    # synthetic backbone feature_dim=32, latent_dim=32, num_outputs=1.
    N, CIN, H, W = 2, 2, 16, 16
    FEATURE_DIM, LATENT_DIM, NUM_OUTPUTS = 32, 32, 1

    key = jax.random.PRNGKey(0)
    kx, kp = jax.random.split(key)
    x = jax.random.normal(kx, (N, CIN, H, W), jnp.float32)   # NCHW like PyTorch
    params = init_params(kp, CIN, FEATURE_DIM, LATENT_DIM, NUM_OUTPUTS)

    out = cmr_forward(x, params)
    out = jax.block_until_ready(out)

    ref = reference_forward(x, params)
    assert out.shape == (N, NUM_OUTPUTS)
    assert jnp.allclose(out, ref, rtol=1e-2, atol=1e-2), (out, ref)

    print("KERNEL_OK")
</pallas_src>

<mosaic_0001>
module attributes {stable_mosaic.version = 11 : i64} {
  func.func @_cmr_kernel(%arg0: i32, %arg1: memref<1x2x640xf32, #tpu.memory_space<vmem>>, %arg2: memref<128x18xf32, #tpu.memory_space<vmem>>, %arg3: memref<128x1xf32, #tpu.memory_space<vmem>>, %arg4: memref<384x1xf32, #tpu.memory_space<vmem>>, %arg5: memref<128x128xf32, #tpu.memory_space<vmem>>, %arg6: memref<128x1xf32, #tpu.memory_space<vmem>>, %arg7: memref<1x128x1xf32, #tpu.memory_space<vmem>>) attributes {dimension_semantics = [#tpu.dimension_semantics<parallel>], iteration_bounds = array<i64: 2>, scalar_prefetch = 0 : i64, scratch_operands = 0 : i64, tpu.core_type = #tpu.core_type<tc>, window_params = [{transform_indices = @transform_0, window_bounds = array<i64: 1, 2, 640>}, {pipeline_mode = #tpu.pipeline_mode<synchronous>, transform_indices = @transform_1, window_bounds = array<i64: 128, 18>}, {pipeline_mode = #tpu.pipeline_mode<synchronous>, transform_indices = @transform_2, window_bounds = array<i64: 128, 1>}, {pipeline_mode = #tpu.pipeline_mode<synchronous>, transform_indices = @transform_3, window_bounds = array<i64: 384, 1>}, {pipeline_mode = #tpu.pipeline_mode<synchronous>, transform_indices = @transform_4, window_bounds = array<i64: 128, 128>}, {pipeline_mode = #tpu.pipeline_mode<synchronous>, transform_indices = @transform_5, window_bounds = array<i64: 128, 1>}, {transform_indices = @transform_6, window_bounds = array<i64: 1, 128, 1>}]} {
    %c0 = arith.constant 0 : index
    %c0_0 = arith.constant 0 : index
    %c0_1 = arith.constant 0 : index
    %0 = vector.load %arg1[%c0, %c0_0, %c0_1] : memref<1x2x640xf32, #tpu.memory_space<vmem>>, vector<1x2x640xf32>
    %1 = vector.shape_cast %0 : vector<1x2x640xf32> to vector<2x640xf32>
    %2 = vector.extract_strided_slice %1 {offsets = [0, 109], sizes = [2, 384], strides = [1, 1]} : vector<2x640xf32> to vector<2x384xf32>
    %3 = vector.extract_strided_slice %1 {offsets = [0, 110], sizes = [2, 384], strides = [1, 1]} : vector<2x640xf32> to vector<2x384xf32>
    %4 = vector.extract_strided_slice %1 {offsets = [0, 111], sizes = [2, 384], strides = [1, 1]} : vector<2x640xf32> to vector<2x384xf32>
    %5 = vector.extract_strided_slice %1 {offsets = [0, 127], sizes = [2, 384], strides = [1, 1]} : vector<2x640xf32> to vector<2x384xf32>
    %6 = vector.extract_strided_slice %1 {offsets = [0, 128], sizes = [2, 384], strides = [1, 1]} : vector<2x640xf32> to vector<2x384xf32>
    %7 = vector.extract_strided_slice %1 {offsets = [0, 129], sizes = [2, 384], strides = [1, 1]} : vector<2x640xf32> to vector<2x384xf32>
    %8 = vector.extract_strided_slice %1 {offsets = [0, 145], sizes = [2, 384], strides = [1, 1]} : vector<2x640xf32> to vector<2x384xf32>
    %9 = vector.extract_strided_slice %1 {offsets = [0, 146], sizes = [2, 384], strides = [1, 1]} : vector<2x640xf32> to vector<2x384xf32>
    %10 = vector.extract_strided_slice %1 {offsets = [0, 147], sizes = [2, 384], strides = [1, 1]} : vector<2x640xf32> to vector<2x384xf32>
    %11 = tpu.concatenate %2, %3, %4, %5, %6, %7, %8, %9, %10 in 0 : vector<2x384xf32>, vector<2x384xf32>, vector<2x384xf32>, vector<2x384xf32>, vector<2x384xf32>, vector<2x384xf32>, vector<2x384xf32>, vector<2x384xf32>, vector<2x384xf32> -> vector<18x384xf32>
    %c0_2 = arith.constant 0 : index
    %c0_3 = arith.constant 0 : index
    %12 = vector.load %arg2[%c0_2, %c0_3] : memref<128x18xf32, #tpu.memory_space<vmem>>, vector<128x18xf32>
    %cst = arith.constant dense<0.000000e+00> : vector<128x384xf32>
    %13 = tpu.matmul %12, %11, %cst {dimension_numbers = #tpu.dot_dimension_numbers<[1], [0], [0], [1], [0, 0, 1, 1], [], []>} : vector<128x18xf32>, vector<18x384xf32>, vector<128x384xf32> -> vector<128x384xf32>
    %c0_4 = arith.constant 0 : index
    %c0_5 = arith.constant 0 : index
    %14 = vector.load %arg3[%c0_4, %c0_5] : memref<128x1xf32, #tpu.memory_space<vmem>>, vector<128x1xf32>
    %15 = vector.broadcast %14 : vector<128x1xf32> to vector<128x384xf32>
    %16 = arith.addf %13, %15 : vector<128x384xf32>
    %cst_6 = arith.constant 0.000000e+00 : f32
    %17 = vector.broadcast %cst_6 : f32 to vector<128x384xf32>
    %18 = arith.maximumf %16, %17 : vector<128x384xf32>
    %c0_7 = arith.constant 0 : index
    %c0_8 = arith.constant 0 : index
    %19 = vector.load %arg4[%c0_7, %c0_8] : memref<384x1xf32, #tpu.memory_space<vmem>>, vector<384x1xf32>
    %cst_9 = arith.constant dense<0.000000e+00> : vector<128x1xf32>
    %20 = tpu.matmul %18, %19, %cst_9 {dimension_numbers = #tpu.dot_dimension_numbers<[1], [0], [0], [1], [0, 0, 1, 1], [], []>} : vector<128x384xf32>, vector<384x1xf32>, vector<128x1xf32> -> vector<128x1xf32>
    %c0_10 = arith.constant 0 : index
    %c0_11 = arith.constant 0 : index
    %21 = vector.load %arg5[%c0_10, %c0_11] : memref<128x128xf32, #tpu.memory_space<vmem>>, vector<128x128xf32>
    %cst_12 = arith.constant dense<0.000000e+00> : vector<128x1xf32>
    %22 = tpu.matmul %21, %20, %cst_12 {dimension_numbers = #tpu.dot_dimension_numbers<[1], [0], [0], [1], [0, 0, 1, 1], [], []>} : vector<128x128xf32>, vector<128x1xf32>, vector<128x1xf32> -> vector<128x1xf32>
    %c0_13 = arith.constant 0 : index
    %c0_14 = arith.constant 0 : index
    %23 = vector.load %arg6[%c0_13, %c0_14] : memref<128x1xf32, #tpu.memory_space<vmem>>, vector<128x1xf32>
    %24 = arith.addf %22, %23 : vector<128x1xf32>
    %c0_15 = arith.constant 0 : index
    %c0_16 = arith.constant 0 : index
    %c0_17 = arith.constant 0 : index
    %25 = vector.load %arg7[%c0_15, %c0_16, %c0_17] : memref<1x128x1xf32, #tpu.memory_space<vmem>>, vector<1x128x1xf32>
    %26 = vector.shape_cast %25 : vector<1x128x1xf32> to vector<128x1xf32>
    %27 = vector.shape_cast %24 : vector<128x1xf32> to vector<1x128x1xf32>
    tpu.vector_store %arg7[%c0_15, %c0_16, %c0_17], %27 {strides = array<i32>} : memref<1x128x1xf32, #tpu.memory_space<vmem>>, vector<1x128x1xf32>,
    return
  }
  func.func @transform_0(%arg0: i32) -> (i32, i32, i32) {
    %c0_i32 = arith.constant 0 : i32
    %c0_i32_0 = arith.constant 0 : i32
    %c0_i32_1 = arith.constant 0 : i32
    return %arg0, %c0_i32, %c0_i32_0 : i32, i32, i32
  }
  func.func @transform_1(%arg0: i32) -> (i32, i32) {
    %c0_i32 = arith.constant 0 : i32
    %c0_i32_0 = arith.constant 0 : i32
    %c0_i32_1 = arith.constant 0 : i32
    return %c0_i32, %c0_i32_0 : i32, i32
  }
  func.func @transform_2(%arg0: i32) -> (i32, i32) {
    %c0_i32 = arith.constant 0 : i32
    %c0_i32_0 = arith.constant 0 : i32
    %c0_i32_1 = arith.constant 0 : i32
    return %c0_i32, %c0_i32_0 : i32, i32
  }
  func.func @transform_3(%arg0: i32) -> (i32, i32) {
    %c0_i32 = arith.constant 0 : i32
    %c0_i32_0 = arith.constant 0 : i32
    %c0_i32_1 = arith.constant 0 : i32
    return %c0_i32, %c0_i32_0 : i32, i32
  }
  func.func @transform_4(%arg0: i32) -> (i32, i32) {
    %c0_i32 = arith.constant 0 : i32
    %c0_i32_0 = arith.constant 0 : i32
    %c0_i32_1 = arith.constant 0 : i32
    return %c0_i32, %c0_i32_0 : i32, i32
  }
  func.func @transform_5(%arg0: i32) -> (i32, i32) {
    %c0_i32 = arith.constant 0 : i32
    %c0_i32_0 = arith.constant 0 : i32
    %c0_i32_1 = arith.constant 0 : i32
    return %c0_i32, %c0_i32_0 : i32, i32
  }
  func.func @transform_6(%arg0: i32) -> (i32, i32, i32) {
    %c0_i32 = arith.constant 0 : i32
    %c0_i32_0 = arith.constant 0 : i32
    %c0_i32_1 = arith.constant 0 : i32
    return %arg0, %c0_i32, %c0_i32_0 : i32, i32, i32
  }
}

</mosaic_0001>

<llo_original>
// kernel: tpu_custom_call.1
$region0: #{tpu_custom_call.1}
  #allocation0 [shape = 'u32[]', space=smem, size = 0x4, offset = 0x4, fixed_abs, tag = 'smem constant byte address 0x4 - core index']
  #allocation1 [shape = 'u32[144,128]{1,0:T(1,128)}', space=vmem, size = 0x12000, scoped, tag = 'internal scratch']
  %s0 = inlined_call_operand.vmem [shape: f32[2,2,640], index: 0, kind: input, shape index: {}]
  %s1 = inlined_call_operand.vmem [shape: f32[128,18], index: 1, kind: input, shape index: {}]
  %s2 = inlined_call_operand.vmem [shape: f32[128,1], index: 2, kind: input, shape index: {}]
  %s3 = inlined_call_operand.vmem [shape: f32[384,1], index: 3, kind: input, shape index: {}]
  %s4 = inlined_call_operand.vmem [shape: f32[128,128], index: 4, kind: input, shape index: {}]
  %s5 = inlined_call_operand.vmem [shape: f32[128,1], index: 5, kind: input, shape index: {}]
  %s6 = inlined_call_operand.vmem [shape: f32[2,128,1], index: 6, kind: output, shape index: {}]
  %s7 = sld [smem:[#allocation0]]
  $region57: #{tpu_custom_call.1} parent=0
    _
  %s9 = ssub.s32 1, %s7
  %s10 = scalar_select 0, %s9, %s7
  loop: start=0, step=1, limit=4
  $region2: #{tpu_custom_call.1} parent=0 // loop_pre_header
    _
  $region3: #{tpu_custom_call.1} parent=0 // loop_header
    %s12 = sphi 0, %s16
    %p13 = scmp.ge.s32.totalorder %s12, 4
    %s22 = sphi 0, %s24
    %s25 = sphi 0, %s22
    %s26 = sphi 0, %s25
    %s42 = sphi 0, %s26
    %s46 = sphi 0, %s46
    %s48 = sphi 0, %s46
    %s49 = sphi 0, %s48
    %s63 = sphi 0, %s49
    %s67 = sphi 0, %s67
    %s69 = sphi 0, %s67
    %s70 = sphi 0, %s69
    %s84 = sphi 0, %s70
    %s88 = sphi 0, %s88
    %s90 = sphi 0, %s88
    %s91 = sphi 0, %s90
    %s105 = sphi 0, %s91
    %s109 = sphi 0, %s109
    %s111 = sphi 0, %s109
    %s112 = sphi 0, %s111
    %s126 = sphi 0, %s112
    %s130 = sphi 0, %s130
    %s132 = sphi 0, %s130
    %s133 = sphi 0, %s132
    %s147 = sphi 0, %s133
    %s153 = sphi 0, %s155
    %s156 = sphi 0, %s153
    %s157 = sphi 0, %s156
    %s173 = sphi 0, %s157
  $region4: #{tpu_custom_call.1} parent=0 // loop_header_branch
    %15 = sbr.rel (%p13) target = $region8
  $region5: #{tpu_custom_call.1} parent=0 // loop_body
    %s17 = ssub.s32 %s12, 1
    %s18 = ssub.s32 %s12, 2
    %s19 = sadd.s32 %s12, 1
    %s20 = ssub.s32 %s12, %s19
    %p21 = scmp.eq.s32.totalorder %s20, 0
    %s23 = sadd.s32 %s22, 1
    %s24 = scalar_select %p21, %s22, %s23
    %p27 = pneg %p21
    %p28 = scmp.eq.s32.totalorder %s12, 1
    %p29 = por %p27, %p28
    %p30 = scmp.ne.s32.totalorder %s22, %s25
    %p31 = scmp.eq.s32.totalorder %s12, 0
    %p32 = por %p30, %p31
    %p33 = scmp.ne.s32.totalorder %s22, %s25
    %p34 = scmp.eq.s32.totalorder %s17, 1
    %p35 = por %p33, %p34
    %p36 = scmp.ne.s32.totalorder %s25, %s26
    %p37 = scmp.eq.s32.totalorder %s17, 0
    %p38 = por %p36, %p37
    %p39 = scmp.ne.s32.totalorder %s25, %s26
    %p40 = scmp.eq.s32.totalorder %s18, 1
    %p41 = por %p39, %p40
    %p43 = scmp.ne.s32.totalorder %s26, %s42
    %p44 = scmp.eq.s32.totalorder %s18, 0
    %p45 = por %p43, %p44
    %s47 = sadd.s32 %s46, 1
    %p50 = scmp.eq.s32.totalorder %s12, 1
    %p51 = scmp.ne.s32.totalorder %s46, %s48
    %p52 = scmp.eq.s32.totalorder %s12, 0
    %p53 = por %p51, %p52
    %p54 = scmp.ne.s32.totalorder %s46, %s48
    %p55 = scmp.eq.s32.totalorder %s17, 1
    %p56 = por %p54, %p55
    %p57 = scmp.ne.s32.totalorder %s48, %s49
    %p58 = scmp.eq.s32.totalorder %s17, 0
    %p59 = por %p57, %p58
    %p60 = scmp.ne.s32.totalorder %s48, %s49
    %p61 = scmp.eq.s32.totalorder %s18, 1
    %p62 = por %p60, %p61
    %p64 = scmp.ne.s32.totalorder %s49, %s63
    %p65 = scmp.eq.s32.totalorder %s18, 0
    %p66 = por %p64, %p65
    %s68 = sadd.s32 %s67, 1
    %p71 = scmp.eq.s32.totalorder %s12, 1
    %p72 = scmp.ne.s32.totalorder %s67, %s69
    %p73 = scmp.eq.s32.totalorder %s12, 0
    %p74 = por %p72, %p73
    %p75 = scmp.ne.s32.totalorder %s67, %s69
    %p76 = scmp.eq.s32.totalorder %s17, 1
    %p77 = por %p75, %p76
    %p78 = scmp.ne.s32.totalorder %s69, %s70
    %p79 = scmp.eq.s32.totalorder %s17, 0
    %p80 = por %p78, %p79
    %p81 = scmp.ne.s32.totalorder %s69, %s70
    %p82 = scmp.eq.s32.totalorder %s18, 1
    %p83 = por %p81, %p82
    %p85 = scmp.ne.s32.totalorder %s70, %s84
    %p86 = scmp.eq.s32.totalorder %s18, 0
    %p87 = por %p85, %p86
    %s89 = sadd.s32 %s88, 1
    %p92 = scmp.eq.s32.totalorder %s12, 1
    %p93 = scmp.ne.s32.totalorder %s88, %s90
    %p94 = scmp.eq.s32.totalorder %s12, 0
    %p95 = por %p93, %p94
    %p96 = scmp.ne.s32.totalorder %s88, %s90
    %p97 = scmp.eq.s32.totalorder %s17, 1
    %p98 = por %p96, %p97
    %p99 = scmp.ne.s32.totalorder %s90, %s91
    %p100 = scmp.eq.s32.totalorder %s17, 0
    %p101 = por %p99, %p100
    %p102 = scmp.ne.s32.totalorder %s90, %s91
    %p103 = scmp.eq.s32.totalorder %s18, 1
    %p104 = por %p102, %p103
    %p106 = scmp.ne.s32.totalorder %s91, %s105
    %p107 = scmp.eq.s32.totalorder %s18, 0
    %p108 = por %p106, %p107
    %s110 = sadd.s32 %s109, 1
    %p113 = scmp.eq.s32.totalorder %s12, 1
    %p114 = scmp.ne.s32.totalorder %s109, %s111
    %p115 = scmp.eq.s32.totalorder %s12, 0
    %p116 = por %p114, %p115
    %p117 = scmp.ne.s32.totalorder %s109, %s111
    %p118 = scmp.eq.s32.totalorder %s17, 1
    %p119 = por %p117, %p118
    %p120 = scmp.ne.s32.totalorder %s111, %s112
    %p121 = scmp.eq.s32.totalorder %s17, 0
    %p122 = por %p120, %p121
    %p123 = scmp.ne.s32.totalorder %s111, %s112
    %p124 = scmp.eq.s32.totalorder %s18, 1
    %p125 = por %p123, %p124
    %p127 = scmp.ne.s32.totalorder %s112, %s126
    %p128 = scmp.eq.s32.totalorder %s18, 0
    %p129 = por %p127, %p128
    %s131 = sadd.s32 %s130, 1
    %p134 = scmp.eq.s32.totalorder %s12, 1
    %p135 = scmp.ne.s32.totalorder %s130, %s132
    %p136 = scmp.eq.s32.totalorder %s12, 0
    %p137 = por %p135, %p136
    %p138 = scmp.ne.s32.totalorder %s130, %s132
    %p139 = scmp.eq.s32.totalorder %s17, 1
    %p140 = por %p138, %p139
    %p141 = scmp.ne.s32.totalorder %s132, %s133
    %p142 = scmp.eq.s32.totalorder %s17, 0
    %p143 = por %p141, %p142
    %p144 = scmp.ne.s32.totalorder %s132, %s133
    %p145 = scmp.eq.s32.totalorder %s18, 1
    %p146 = por %p144, %p145
    %p148 = scmp.ne.s32.totalorder %s133, %s147
    %p149 = scmp.eq.s32.totalorder %s18, 0
    %p150 = por %p148, %p149
    %s151 = ssub.s32 %s12, %s19
    %p152 = scmp.eq.s32.totalorder %s151, 0
    %s154 = sadd.s32 %s153, 1
    %s155 = scalar_select %p152, %s153, %s154
    %p158 = pneg %p152
    %p159 = scmp.eq.s32.totalorder %s12, 1
    %p160 = por %p158, %p159
    %p161 = scmp.ne.s32.totalorder %s153, %s156
    %p162 = scmp.eq.s32.totalorder %s12, 0
    %p163 = por %p161, %p162
    %p164 = scmp.ne.s32.totalorder %s153, %s156
    %p165 = scmp.eq.s32.totalorder %s17, 1
    %p166 = por %p164, %p165
    %p167 = scmp.ne.s32.totalorder %s156, %s157
    %p168 = scmp.eq.s32.totalorder %s17, 0
    %p169 = por %p167, %p168
    %p170 = scmp.ne.s32.totalorder %s156, %s157
    %p171 = scmp.eq.s32.totalorder %s18, 1
    %p172 = por %p170, %p171
    %p174 = scmp.ne.s32.totalorder %s157, %s173
    %p175 = scmp.eq.s32.totalorder %s18, 0
    %p176 = por %p174, %p175
    %p177 = scmp.le.s32.totalorder 1, %s12
    %p178 = scmp.lt.s32.totalorder %s12, 3
    %p179 = pnand %p177, %p178
    %p180 = pneg %p179
    // Predicated region
    $region9: #{tpu_custom_call.1} parent=5 // pred_check
      _
    $region10: #{tpu_custom_call.1} parent=5 // pred_check_branch
      %182 = sbr.rel (%p179) target = $region12
    $region11: #{tpu_custom_call.1} parent=5 // pred_region
      %s183 = ssub.s32 %s12, 1
      // Predicated region
      $region13: #{tpu_custom_call.1} parent=11 // pred_check
        %p184 = pneg %p59
      $region14: #{tpu_custom_call.1} parent=11 // pred_check_branch
        %186 = sbr.rel (%p184) target = $region16
      $region15: #{tpu_custom_call.1} parent=11 // pred_region
        _
      $region16: #{tpu_custom_call.1} parent=11 // pred_fallthru
        _
      // Predicated region
      $region17: #{tpu_custom_call.1} parent=11 // pred_check
        %p187 = pneg %p80
      $region18: #{tpu_custom_call.1} parent=11 // pred_check_branch
        %189 = sbr.rel (%p187) target = $region20
      $region19: #{tpu_custom_call.1} parent=11 // pred_region
        _
      $region20: #{tpu_custom_call.1} parent=11 // pred_fallthru
        _
      // Predicated region
      $region21: #{tpu_custom_call.1} parent=11 // pred_check
        %p190 = pneg %p101
      $region22: #{tpu_custom_call.1} parent=11 // pred_check_branch
        %192 = sbr.rel (%p190) target = $region24
      $region23: #{tpu_custom_call.1} parent=11 // pred_region
        _
      $region24: #{tpu_custom_call.1} parent=11 // pred_fallthru
        _
      // Predicated region
      $region25: #{tpu_custom_call.1} parent=11 // pred_check
        %p193 = pneg %p122
      $region26: #{tpu_custom_call.1} parent=11 // pred_check_branch
        %195 = sbr.rel (%p193) target = $region28
      $region27: #{tpu_custom_call.1} parent=11 // pred_region
        _
      $region28: #{tpu_custom_call.1} parent=11 // pred_fallthru
        _
      // Predicated region
      $region29: #{tpu_custom_call.1} parent=11 // pred_check
        %p196 = pneg %p143
      $region30: #{tpu_custom_call.1} parent=11 // pred_check_branch
        %198 = sbr.rel (%p196) target = $region32
      $region31: #{tpu_custom_call.1} parent=11 // pred_region
        _
      $region32: #{tpu_custom_call.1} parent=11 // pred_fallthru
        _
    $region12: #{tpu_custom_call.1} parent=5 // pred_fallthru
      _
    %p199 = scmp.lt.s32.totalorder %s12, 2
    // Predicated region
    $region33: #{tpu_custom_call.1} parent=5 // pred_check
      %p200 = pneg %p199
    $region34: #{tpu_custom_call.1} parent=5 // pred_check_branch
      %202 = sbr.rel (%p200) target = $region36
    $region35: #{tpu_custom_call.1} parent=5 // pred_region
      // Predicated region
      $region37: #{tpu_custom_call.1} parent=35 // pred_check
        %p203 = pneg %p32
      $region38: #{tpu_custom_call.1} parent=35 // pred_check_branch
        %205 = sbr.rel (%p203) target = $region40
      $region39: #{tpu_custom_call.1} parent=35 // pred_region
        %p206 = scmp.lt.s32.totalorder %s12, 1
        %s207 = scalar_select %p206, %s12, 1
        %s208 = smul.addr %s207, 5
        %s209 = smul.addr %s208, 2
        %s210 = scalar_lea.vmem %s0, %s209
      $region40: #{tpu_custom_call.1} parent=35 // pred_fallthru
        _
    $region36: #{tpu_custom_call.1} parent=5 // pred_fallthru
      _
    %p211 = scmp.le.s32.totalorder 1, %s12
    %p212 = scmp.lt.s32.totalorder %s12, 3
    %p213 = pnand %p211, %p212
    %p214 = pneg %p213
    // Predicated region
    $region41: #{tpu_custom_call.1} parent=5 // pred_check
      _
    $region42: #{tpu_custom_call.1} parent=5 // pred_check_branch
      %216 = sbr.rel (%p213) target = $region44
    $region43: #{tpu_custom_call.1} parent=5 // pred_region
      %s217 = ssub.s32 %s12, 1
      %p218 = scmp.lt.s32.totalorder %s17, 1
      %s219 = scalar_select %p218, %s17, 1
      %s220 = smul.addr %s219, 5
      %s221 = smul.addr %s220, 2
      %s222 = scalar_lea.vmem %s0, %s221
      %p223 = pneg %p38
      %p224 = pneg %p35
      %p225 = pneg %p59
      %p226 = pneg %p56
      %p227 = pneg %p80
      %p228 = pneg %p77
      %p229 = pneg %p101
      %p230 = pneg %p98
      %p231 = pneg %p122
      %p232 = pneg %p119
      %p233 = pneg %p143
      %p234 = pneg %p140
      %p235 = pneg %p169
      %p236 = pneg %p166
      %p237 = scmp.lt.s32.totalorder %s17, 1
      %s238 = scalar_select %p237, %s17, 1
      %s239 = smul.addr %s238, 16
      %s240 = smul.addr %s239, 8
      %s241 = scalar_lea.vmem %s6, %s240
      %p242 = scmp.lt.s32.totalorder %s17, 1
      %s243 = scalar_select %p242, %s17, 1
      %s244 = smul.addr %s243, 5
      %s245 = smul.addr %s244, 2
      %s246 = scalar_lea.vmem %s0, %s245
      %p247 = scmp.lt.s32.totalorder %s17, 1
      %s248 = scalar_select %p247, %s17, 1
      %s249 = smul.addr %s248, 16
      %s250 = smul.addr %s249, 8
      %s251 = scalar_lea.vmem %s6, %s250
      %v252 = vld [vmem:[%s246] sm:$0xff]
      %v253 = vld [vmem:[%s246 + $0x8] sm:$0x3]
      %v255 = vcombine.high %v252, %v252
      %v257 = vunpack.c.l.s4 1983009808
      %v258 = vunpack.c.0.s8 %v257
      %v259 = vlaneseq
      %v260 = vshrl.u32 %v259, 7
      %v261 = vsub.s32 %v258, %v260
      %v262 = vrot.slane %v252, %v261
      %v264 = vunpack.c.l.s4 1983009808
      %v265 = vunpack.c.0.s8 %v264
      %v266 = vlaneseq
      %v267 = vshrl.u32 %v266, 7
      %v268 = vsub.s32 %v265, %v267
      %v269 = vrot.slane %v255, %v268
      %v270 = vcombine.high %v262, %v262
      %v271 = vcombine.high %v269, %v269
      %v276 = vcombine.low %v252, %v252
      %v278 = vunpack.c.l.s4 1983009808
      %v279 = vunpack.c.0.s8 %v278
      %v280 = vlaneseq
      %v281 = vshrl.u32 %v280, 7
      %v282 = vsub.s32 %v279, %v281
      %v283 = vrot.slane %v276, %v282
      %v284 = vcombine.high %v283, %v283
      %285 = vrot.lane.b32.xlu0 %v283, 127
      %v286 = vpop.permute.xlu0 %285
      %287 = vrot.lane.b32.xlu0 %v284, 127
      %v288 = vpop.permute.xlu0 %287
      %289 = vrot.lane.b32.xlu0 %v262, 127
      %v290 = vpop.permute.xlu0 %289
      %291 = vrot.lane.b32.xlu0 %v270, 127
      %v292 = vpop.permute.xlu0 %291
      %vm293 = vcmask 1039360
      %v294 = vsel %vm293, %v286, %v288
      %v295 = vsel %vm293, %v288, %v290
      %v296 = vsel %vm293, %v290, %v292
      %v301 = vcombine.low %v262, %v262
      %v302 = vcombine.low %v269, %v269
      %303 = vrot.lane.b32.xlu0 %v301, 126
      %v304 = vpop.permute.xlu0 %303
      %305 = vrot.lane.b32.xlu0 %v262, 126
      %v306 = vpop.permute.xlu0 %305
      %307 = vrot.lane.b32.xlu0 %v302, 126
      %v308 = vpop.permute.xlu0 %307
      %309 = vrot.lane.b32.xlu0 %v269, 126
      %v310 = vpop.permute.xlu0 %309
      %vm311 = vcmask 1031168
      %v312 = vsel %vm311, %v304, %v306
      %v313 = vsel %vm311, %v306, %v308
      %v314 = vsel %vm311, %v308, %v310
      %v319 = vcombine.low %v283, %v283
      %320 = vrot.lane.b32.xlu0 %v319, 110
      %v321 = vpop.permute.xlu0 %320
      %322 = vrot.lane.b32.xlu0 %v283, 110
      %v323 = vpop.permute.xlu0 %322
      %324 = vrot.lane.b32.xlu0 %v301, 110
      %v325 = vpop.permute.xlu0 %324
      %326 = vrot.lane.b32.xlu0 %v262, 110
      %v327 = vpop.permute.xlu0 %326
      %vm328 = vcmask 900096
      %v329 = vsel %vm328, %v321, %v323
      %v330 = vsel %vm328, %v323, %v325
      %v331 = vsel %vm328, %v325, %v327
      %336 = vrot.lane.b32.xlu0 %v270, 109
      %v337 = vpop.permute.xlu0 %336
      %338 = vrot.lane.b32.xlu0 %v269, 109
      %v339 = vpop.permute.xlu0 %338
      %340 = vrot.lane.b32.xlu0 %v271, 109
      %v341 = vpop.permute.xlu0 %340
      %vm342 = vcmask 891904
      %v343 = vsel %vm342, %v337, %v339
      %v344 = vsel %vm342, %v339, %v341
      %v350 = vcombine.low %v253, %v253
      %v352 = vunpack.c.l.s4 1983009808
      %v353 = vunpack.c.0.s8 %v352
      %v354 = vlaneseq
      %v355 = vshrl.u32 %v354, 7
      %v356 = vsub.s32 %v353, %v355
      %v357 = vrot.slane %v350, %v356
      %v359 = vunpack.c.l.s4 1983009808
      %v360 = vunpack.c.0.s8 %v359
      %v361 = vlaneseq
      %v362 = vshrl.u32 %v361, 7
      %v363 = vsub.s32 %v360, %v362
      %v364 = vrot.slane %v253, %v363
      %365 = vrot.lane.b32.xlu0 %v284, 108
      %v366 = vpop.permute.xlu0 %365
      %367 = vrot.lane.b32.xlu0 %v262, 108
      %v368 = vpop.permute.xlu0 %367
      %369 = vrot.lane.b32.xlu0 %v270, 108
      %v370 = vpop.permute.xlu0 %369
      %371 = vrot.lane.b32.xlu0 %v357, 108
      %v372 = vpop.permute.xlu0 %371
      %vm373 = vcmask 883712
      %v374 = vsel %vm373, %v366, %v368
      %v375 = vsel %vm373, %v368, %v370
      %v376 = vsel %vm373, %v370, %v372
      %v381 = vcombine.low %v364, %v364
      %382 = vrot.lane.b32.xlu0 %v262, 92
      %v383 = vpop.permute.xlu0 %382
      %384 = vrot.lane.b32.xlu0 %v302, 92
      %v385 = vpop.permute.xlu0 %384
      %386 = vrot.lane.b32.xlu0 %v269, 92
      %v387 = vpop.permute.xlu0 %386
      %388 = vrot.lane.b32.xlu0 %v381, 92
      %v389 = vpop.permute.xlu0 %388
      %vm390 = vcmask 752640
      %v391 = vsel %vm390, %v383, %v385
      %v392 = vsel %vm390, %v385, %v387
      %v393 = vsel %vm390, %v387, %v389
      %v398 = vcombine.low %v357, %v357
      %399 = vrot.lane.b32.xlu0 %v283, 91
      %v400 = vpop.permute.xlu0 %399
      %401 = vrot.lane.b32.xlu0 %v301, 91
      %v402 = vpop.permute.xlu0 %401
      %403 = vrot.lane.b32.xlu0 %v262, 91
      %v404 = vpop.permute.xlu0 %403
      %405 = vrot.lane.b32.xlu0 %v398, 91
      %v406 = vpop.permute.xlu0 %405
      %vm407 = vcmask 744448
      %v408 = vsel %vm407, %v400, %v402
      %v409 = vsel %vm407, %v402, %v404
      %v410 = vsel %vm407, %v404, %v406
      %415 = vrot.lane.b32.xlu0 %v270, 90
      %v416 = vpop.permute.xlu0 %415
      %417 = vrot.lane.b32.xlu0 %v269, 90
      %v418 = vpop.permute.xlu0 %417
      %419 = vrot.lane.b32.xlu0 %v271, 90
      %v420 = vpop.permute.xlu0 %419
      %421 = vrot.lane.b32.xlu0 %v364, 90
      %v422 = vpop.permute.xlu0 %421
      %vm423 = vcmask 736256
      %v424 = vsel %vm423, %v416, %v418
      %v425 = vsel %vm423, %v418, %v420
      %v426 = vsel %vm423, %v420, %v422
      %vm427 = vcmask 1041408
      %v428 = vsel %vm427, %v262, %v294
      %v429 = vsel %vm427, %v270, %v295
      %v430 = vsel %vm427, %v269, %v296
      %v431 = vsel %vm427, %v271, %v292
      %vm432 = vcmask 1043456
      %v433 = vsel %vm432, %v428, %v312
      %v434 = vsel %vm432, %v429, %v313
      %v435 = vsel %vm432, %v430, %v314
      %v436 = vsel %vm432, %v431, %v310
      %vm437 = vcmask 1045504
      %v438 = vsel %vm437, %v433, %v329
      %v439 = vsel %vm437, %v434, %v330
      %v440 = vsel %vm437, %v435, %v331
      %v441 = vsel %vm437, %v436, %v327
      %v442 = vsel %vm427, %v337, %v366
      %v443 = vsel %vm427, %v343, %v374
      %v444 = vsel %vm427, %v344, %v375
      %v445 = vsel %vm427, %v341, %v376
      %v446 = vsel %vm432, %v442, %v383
      %v447 = vsel %vm432, %v443, %v391
      %v448 = vsel %vm432, %v444, %v392
      %v449 = vsel %vm432, %v445, %v393
      %v450 = vsel %vm437, %v446, %v400
      %v451 = vsel %vm437, %v447, %v408
      %v452 = vsel %vm437, %v448, %v409
      %v453 = vsel %vm437, %v449, %v410
      %v454 = vld [vmem:[%s1] sm:$0xff]
      %v455 = vld [vmem:[%s1 + $0x8] sm:$0xff]
      %v456 = vld [vmem:[%s1 + $0x10] sm:$0xff]
      %v457 = vld [vmem:[%s1 + $0x18] sm:$0xff]
      %v458 = vld [vmem:[%s1 + $0x20] sm:$0xff]
      %v459 = vld [vmem:[%s1 + $0x28] sm:$0xff]
      %v460 = vld [vmem:[%s1 + $0x30] sm:$0xff]
      %v461 = vld [vmem:[%s1 + $0x38] sm:$0xff]
      %v462 = vld [vmem:[%s1 + $0x40] sm:$0xff]
      %v463 = vld [vmem:[%s1 + $0x48] sm:$0xff]
      %v464 = vld [vmem:[%s1 + $0x50] sm:$0xff]
      %v465 = vld [vmem:[%s1 + $0x58] sm:$0xff]
      %v466 = vld [vmem:[%s1 + $0x60] sm:$0xff]
      %v467 = vld [vmem:[%s1 + $0x68] sm:$0xff]
      %v468 = vld [vmem:[%s1 + $0x70] sm:$0xff]
      %v469 = vld [vmem:[%s1 + $0x78] sm:$0xff]
      %v470 = vld [vmem:[%s2] sm:$0xff]
      %v471 = vld [vmem:[%s2 + $0x8] sm:$0xff]
      %v472 = vld [vmem:[%s2 + $0x10] sm:$0xff]
      %v473 = vld [vmem:[%s2 + $0x18] sm:$0xff]
      %v474 = vld [vmem:[%s2 + $0x20] sm:$0xff]
      %v475 = vld [vmem:[%s2 + $0x28] sm:$0xff]
      %v476 = vld [vmem:[%s2 + $0x30] sm:$0xff]
      %v477 = vld [vmem:[%s2 + $0x38] sm:$0xff]
      %v478 = vld [vmem:[%s2 + $0x40] sm:$0xff]
      %v479 = vld [vmem:[%s2 + $0x48] sm:$0xff]
      %v480 = vld [vmem:[%s2 + $0x50] sm:$0xff]
      %v481 = vld [vmem:[%s2 + $0x58] sm:$0xff]
      %v482 = vld [vmem:[%s2 + $0x60] sm:$0xff]
      %v483 = vld [vmem:[%s2 + $0x68] sm:$0xff]
      %v484 = vld [vmem:[%s2 + $0x70] sm:$0xff]
      %v485 = vld [vmem:[%s2 + $0x78] sm:$0xff]
      %487 = vset.pattern.permute.xlu0 0
      %488 = vperm.xlu0 %487, %v470
      %v489 = vpop.permute.xlu0 %488
      %492 = vset.pattern.permute.xlu0 0
      %493 = vperm.xlu0 %492, %v471
      %v494 = vpop.permute.xlu0 %493
      %497 = vset.pattern.permute.xlu0 0
      %498 = vperm.xlu0 %497, %v472
      %v499 = vpop.permute.xlu0 %498
      %502 = vset.pattern.permute.xlu0 0
      %503 = vperm.xlu0 %502, %v473
      %v504 = vpop.permute.xlu0 %503
      %507 = vset.pattern.permute.xlu0 0
      %508 = vperm.xlu0 %507, %v474
      %v509 = vpop.permute.xlu0 %508
      %512 = vset.pattern.permute.xlu0 0
      %513 = vperm.xlu0 %512, %v475
      %v514 = vpop.permute.xlu0 %513
      %517 = vset.pattern.permute.xlu0 0
      %518 = vperm.xlu0 %517, %v476
      %v519 = vpop.permute.xlu0 %518
      %522 = vset.pattern.permute.xlu0 0
      %523 = vperm.xlu0 %522, %v477
      %v524 = vpop.permute.xlu0 %523
      %527 = vset.pattern.permute.xlu0 0
      %528 = vperm.xlu0 %527, %v478
      %v529 = vpop.permute.xlu0 %528
      %532 = vset.pattern.permute.xlu0 0
      %533 = vperm.xlu0 %532, %v479
      %v534 = vpop.permute.xlu0 %533
      %537 = vset.pattern.permute.xlu0 0
      %538 = vperm.xlu0 %537, %v480
      %v539 = vpop.permute.xlu0 %538
      %542 = vset.pattern.permute.xlu0 0
      %543 = vperm.xlu0 %542, %v481
      %v544 = vpop.permute.xlu0 %543
      %547 = vset.pattern.permute.xlu0 0
      %548 = vperm.xlu0 %547, %v482
      %v549 = vpop.permute.xlu0 %548
      %552 = vset.pattern.permute.xlu0 0
      %553 = vperm.xlu0 %552, %v483
      %v554 = vpop.permute.xlu0 %553
      %557 = vset.pattern.permute.xlu0 0
      %558 = vperm.xlu0 %557, %v484
      %v559 = vpop.permute.xlu0 %558
      %562 = vset.pattern.permute.xlu0 0
      %563 = vperm.xlu0 %562, %v485
      %v564 = vpop.permute.xlu0 %563
      %574 = vrot.lane.b32.xlu0 %v438, 19
      %v575 = vpop.permute.xlu0 %574
      %576 = vrot.lane.b32.xlu0 %v439, 19
      %v577 = vpop.permute.xlu0 %576
      %578 = vrot.lane.b32.xlu0 %v440, 19
      %v579 = vpop.permute.xlu0 %578
      %580 = vrot.lane.b32.xlu0 %v441, 19
      %v581 = vpop.permute.xlu0 %580
      %582 = vrot.lane.b32.xlu0 %v450, 19
      %v583 = vpop.permute.xlu0 %582
      %584 = vrot.lane.b32.xlu0 %v451, 19
      %v585 = vpop.permute.xlu0 %584
      %586 = vrot.lane.b32.xlu0 %v452, 19
      %v587 = vpop.permute.xlu0 %586
      %588 = vrot.lane.b32.xlu0 %v453, 19
      %v589 = vpop.permute.xlu0 %588
      %590 = vrot.lane.b32.xlu0 %v416, 19
      %v591 = vpop.permute.xlu0 %590
      %592 = vrot.lane.b32.xlu0 %v424, 19
      %v593 = vpop.permute.xlu0 %592
      %594 = vrot.lane.b32.xlu0 %v425, 19
      %v595 = vpop.permute.xlu0 %594
      %596 = vrot.lane.b32.xlu0 %v426, 19
      %v597 = vpop.permute.xlu0 %596
      %vm598 = vcmask 154624
      %v599 = vsel %vm598, %v575, %v577
      %v600 = vsel %vm598, %v577, %v579
      %v601 = vsel %vm598, %v579, %v581
      %v602 = vsel %vm598, %v583, %v585
      %v603 = vsel %vm598, %v585, %v587
      %v604 = vsel %vm598, %v587, %v589
      %v605 = vsel %vm598, %v591, %v593
      %v606 = vsel %vm598, %v593, %v595
      %v607 = vsel %vm598, %v595, %v597
      %vm614 = vcmask 146432
      %v616 = vsel %vm614, %v454, 0
      %v619 = vsel %vm614, %v455, 0
      %v622 = vsel %vm614, %v456, 0
      %v625 = vsel %vm614, %v457, 0
      %v628 = vsel %vm614, %v458, 0
      %v631 = vsel %vm614, %v459, 0
      %v634 = vsel %vm614, %v460, 0
      %v637 = vsel %vm614, %v461, 0
      %v640 = vsel %vm614, %v462, 0
      %v643 = vsel %vm614, %v463, 0
      %v646 = vsel %vm614, %v464, 0
      %v649 = vsel %vm614, %v465, 0
      %v652 = vsel %vm614, %v466, 0
      %v655 = vsel %vm614, %v467, 0
      %v658 = vsel %vm614, %v468, 0
      %v661 = vsel %vm614, %v469, 0
      %v663 = vsel %vm427, %v605, 0
      %v665 = vsel %vm427, %v606, 0
      %v667 = vsel %vm427, %v607, 0
      %669 = vmatprep.subr.mxu0 %v600
      %670 = vmatpush1.msra.mxu0 %v599
      %671 = vmatprep.subr.mxu0 %v603
      %672 = vmatpush1.msra.mxu0 %v602
      %673 = vmatprep.subr.mxu0 %v665
      %674 = vmatpush1.msra.mxu0 %v663
      %675 = vmatprep.subr.mxu0 0.0
      %676 = vmatpush1.msra.mxu0 0.0
      %677 = vmatprep.subr.mxu0 0.0
      %678 = vmatpush1.msra.mxu0 0.0
      %679 = vmatprep.subr.mxu0 0.0
      %680 = vmatpush1.msra.mxu0 0.0
      %681 = vmatprep.subr.mxu0 0.0
      %682 = vmatpush1.msra.mxu0 0.0
      %683 = vmatprep.subr.mxu0 0.0
      %684 = vmatpush1.msra.mxu0 0.0
      %685 = vmatprep.subr.mxu0 0.0
      %686 = vmatpush1.msra.mxu0 0.0
      %687 = vmatprep.subr.mxu0 0.0
      %688 = vmatpush1.msra.mxu0 0.0
      %689 = vmatprep.subr.mxu0 0.0
      %690 = vmatpush1.msra.mxu0 0.0
      %691 = vmatprep.subr.mxu0 0.0
      %692 = vmatpush1.msra.mxu0 0.0
      %693 = vmatprep.subr.mxu0 0.0
      %694 = vmatpush1.msra.mxu0 0.0
      %695 = vmatprep.subr.mxu0 0.0
      %696 = vmatpush1.msra.mxu0 0.0
      %697 = vmatprep.subr.mxu0 0.0
      %698 = vmatpush1.msra.mxu0 0.0
      %699 = vmatprep.subr.mxu0 0.0
      %700 = vmatpush1.msra.mxu0 0.0
      %701 = vmatprep.subr.mxu0 0.0
      %702 = vmatpush1.msra.mxu0 0.0
      %703 = vmatprep.subr.mxu0 0.0
      %704 = vmatpush1.msra.mxu0 0.0
      %705 = vmatprep.subr.mxu0 0.0
      %706 = vmatpush1.msra.mxu0 0.0
      %707 = vmatprep.subr.mxu0 0.0
      %708 = vmatpush1.msra.mxu0 0.0
      %709 = vmatprep.subr.mxu0 0.0
      %710 = vmatpush1.msra.mxu0 0.0
      %711 = vmatprep.subr.mxu0 0.0
      %712 = vmatpush1.msra.mxu0 0.0
      %713 = vmatprep.subr.mxu0 0.0
      %714 = vmatpush1.msra.mxu0 0.0
      %715 = vmatprep.subr.mxu0 0.0
      %716 = vmatpush1.msra.mxu0 0.0
      %717 = vmatprep.subr.mxu0 0.0
      %718 = vmatpush1.msra.mxu0 0.0
      %719 = vmatprep.subr.mxu0 0.0
      %720 = vmatpush1.msra.mxu0 0.0
      %721 = vmatprep.subr.mxu0 0.0
      %722 = vmatpush1.msra.mxu0 0.0
      %723 = vmatprep.subr.mxu0 0.0
      %724 = vmatpush1.msra.mxu0 0.0
      %725 = vmatprep.subr.mxu0 0.0
      %726 = vmatpush1.msra.mxu0 0.0
      %727 = vmatprep.subr.mxu0 0.0
      %728 = vmatpush1.msra.mxu0 0.0
      %729 = vmatprep.subr.mxu0 0.0
      %730 = vmatpush1.msra.mxu0 0.0
      %731 = vmatprep.subr.mxu0 0.0
      %732 = vmatpush1.msra.mxu0 0.0
      %733 = vmatprep.mubr.f32.mxu0 0.0
      %734 = vmatmul.mubr.f32.gmra.mrb[0].mxu0 %v616
      %v735 = vpop.f32.mrb[0].mxu0
      %v736 = vadd.f32 %v489, %v735
      %v737 = vpop.f32.mrb[0].mxu0
      %v738 = vadd.f32 %v489, %v737
      %739 = vmatprep.mubr.f32.mxu0 0.0
      %740 = vmatmul.mubr.f32.gmra.mrb[0].mxu0 %v619
      %v741 = vpop.f32.mrb[0].mxu0
      %v742 = vadd.f32 %v494, %v741
      %v743 = vpop.f32.mrb[0].mxu0
      %v744 = vadd.f32 %v494, %v743
      %745 = vmatprep.mubr.f32.mxu0 0.0
      %746 = vmatmul.mubr.f32.gmra.mrb[0].mxu0 %v622
      %v747 = vpop.f32.mrb[0].mxu0
      %v748 = vadd.f32 %v499, %v747
      %v749 = vpop.f32.mrb[0].mxu0
      %v750 = vadd.f32 %v499, %v749
      %751 = vmatprep.mubr.f32.mxu0 0.0
      %752 = vmatmul.mubr.f32.gmra.mrb[0].mxu0 %v625
      %v753 = vpop.f32.mrb[0].mxu0
      %v754 = vadd.f32 %v504, %v753
      %v755 = vpop.f32.mrb[0].mxu0
      %v756 = vadd.f32 %v504, %v755
      %757 = vmatprep.mubr.f32.mxu0 0.0
      %758 = vmatmul.mubr.f32.gmra.mrb[0].mxu0 %v628
      %v759 = vpop.f32.mrb[0].mxu0
      %v760 = vadd.f32 %v509, %v759
      %v761 = vpop.f32.mrb[0].mxu0
      %v762 = vadd.f32 %v509, %v761
      %763 = vmatprep.mubr.f32.mxu0 0.0
      %764 = vmatmul.mubr.f32.gmra.mrb[0].mxu0 %v631
      %v765 = vpop.f32.mrb[0].mxu0
      %v766 = vadd.f32 %v514, %v765
      %v767 = vpop.f32.mrb[0].mxu0
      %v768 = vadd.f32 %v514, %v767
      %769 = vmatprep.mubr.f32.mxu0 0.0
      %770 = vmatmul.mubr.f32.gmra.mrb[0].mxu0 %v634
      %v771 = vpop.f32.mrb[0].mxu0
      %v772 = vadd.f32 %v519, %v771
      %v773 = vpop.f32.mrb[0].mxu0
      %v774 = vadd.f32 %v519, %v773
      %775 = vmatprep.mubr.f32.mxu0 0.0
      %776 = vmatmul.mubr.f32.gmra.mrb[0].mxu0 %v637
      %v777 = vpop.f32.mrb[0].mxu0
      %v778 = vadd.f32 %v524, %v777
      %v779 = vpop.f32.mrb[0].mxu0
      %v780 = vadd.f32 %v524, %v779
      %781 = vmatprep.mubr.f32.mxu0 0.0
      %782 = vmatmul.mubr.f32.gmra.mrb[0].mxu0 %v640
      %v783 = vpop.f32.mrb[0].mxu0
      %v784 = vadd.f32 %v529, %v783
      %v785 = vpop.f32.mrb[0].mxu0
      %v786 = vadd.f32 %v529, %v785
      %787 = vmatprep.mubr.f32.mxu0 0.0
      %788 = vmatmul.mubr.f32.gmra.mrb[0].mxu0 %v643
      %v789 = vpop.f32.mrb[0].mxu0
      %v790 = vadd.f32 %v534, %v789
      %v791 = vpop.f32.mrb[0].mxu0
      %v792 = vadd.f32 %v534, %v791
      %793 = vmatprep.mubr.f32.mxu0 0.0
      %794 = vmatmul.mubr.f32.gmra.mrb[0].mxu0 %v646
      %v795 = vpop.f32.mrb[0].mxu0
      %v796 = vadd.f32 %v539, %v795
      %v797 = vpop.f32.mrb[0].mxu0
      %v798 = vadd.f32 %v539, %v797
      %799 = vmatprep.mubr.f32.mxu0 0.0
      %800 = vmatmul.mubr.f32.gmra.mrb[0].mxu0 %v649
      %v801 = vpop.f32.mrb[0].mxu0
      %v802 = vadd.f32 %v544, %v801
      %v803 = vpop.f32.mrb[0].mxu0
      %v804 = vadd.f32 %v544, %v803
      %805 = vmatprep.mubr.f32.mxu0 0.0
      %806 = vmatmul.mubr.f32.gmra.mrb[0].mxu0 %v652
      %v807 = vpop.f32.mrb[0].mxu0
      %v808 = vadd.f32 %v549, %v807
      %v809 = vpop.f32.mrb[0].mxu0
      %v810 = vadd.f32 %v549, %v809
      %811 = vmatprep.mubr.f32.mxu0 0.0
      %812 = vmatmul.mubr.f32.gmra.mrb[0].mxu0 %v655
      %v813 = vpop.f32.mrb[0].mxu0
      %v814 = vadd.f32 %v554, %v813
      %v815 = vpop.f32.mrb[0].mxu0
      %v816 = vadd.f32 %v554, %v815
      %817 = vmatprep.mubr.f32.mxu0 0.0
      %818 = vmatmul.mubr.f32.gmra.mrb[0].mxu0 %v658
      %v819 = vpop.f32.mrb[0].mxu0
      %v820 = vadd.f32 %v559, %v819
      %v821 = vpop.f32.mrb[0].mxu0
      %v822 = vadd.f32 %v559, %v821
      %823 = vmatprep.mubr.f32.mxu0 0.0
      %824 = vmatmul.mubr.f32.gmra.mrb[0].mxu0 %v661
      %v825 = vpop.f32.mrb[0].mxu0
      %v826 = vadd.f32 %v564, %v825
      %v827 = vpop.f32.mrb[0].mxu0
      %v828 = vadd.f32 %v564, %v827
      %829 = vdwg.mxu0
      %830 = vmatprep.subr.mxu0 0.0
      %831 = vmatpush1.msra.mxu0 %v601
      %832 = vmatprep.subr.mxu0 0.0
      %833 = vmatpush1.msra.mxu0 %v604
      %834 = vmatprep.subr.mxu0 0.0
      %835 = vmatpush1.msra.mxu0 %v667
      %836 = vmatprep.subr.mxu0 0.0
      %837 = vmatpush1.msra.mxu0 0.0
      %838 = vmatprep.subr.mxu0 0.0
      %839 = vmatpush1.msra.mxu0 0.0
      %840 = vmatprep.subr.mxu0 0.0
      %841 = vmatpush1.msra.mxu0 0.0
      %842 = vmatprep.subr.mxu0 0.0
      %843 = vmatpush1.msra.mxu0 0.0
      %844 = vmatprep.subr.mxu0 0.0
      %845 = vmatpush1.msra.mxu0 0.0
      %846 = vmatprep.subr.mxu0 0.0
      %847 = vmatpush1.msra.mxu0 0.0
      %848 = vmatprep.subr.mxu0 0.0
      %849 = vmatpush1.msra.mxu0 0.0
      %850 = vmatprep.subr.mxu0 0.0
      %851 = vmatpush1.msra.mxu0 0.0
      %852 = vmatprep.subr.mxu0 0.0
      %853 = vmatpush1.msra.mxu0 0.0
      %854 = vmatprep.subr.mxu0 0.0
      %855 = vmatpush1.msra.mxu0 0.0
      %856 = vmatprep.subr.mxu0 0.0
      %857 = vmatpush1.msra.mxu0 0.0
      %858 = vmatprep.subr.mxu0 0.0
      %859 = vmatpush1.msra.mxu0 0.0
      %860 = vmatprep.subr.mxu0 0.0
      %861 = vmatpush1.msra.mxu0 0.0
      %862 = vmatprep.subr.mxu0 0.0
      %863 = vmatpush1.msra.mxu0 0.0
      %864 = vmatprep.subr.mxu0 0.0
      %865 = vmatpush1.msra.mxu0 0.0
      %866 = vmatprep.subr.mxu0 0.0
      %867 = vmatpush1.msra.mxu0 0.0
      %868 = vmatprep.subr.mxu0 0.0
      %869 = vmatpush1.msra.mxu0 0.0
      %870 = vmatprep.subr.mxu0 0.0
      %871 = vmatpush1.msra.mxu0 0.0
      %872 = vmatprep.subr.mxu0 0.0
      %873 = vmatpush1.msra.mxu0 0.0
      %874 = vmatprep.subr.mxu0 0.0
      %875 = vmatpush1.msra.mxu0 0.0
      %876 = vmatprep.subr.mxu0 0.0
      %877 = vmatpush1.msra.mxu0 0.0
      %878 = vmatprep.subr.mxu0 0.0
      %879 = vmatpush1.msra.mxu0 0.0
      %880 = vmatprep.subr.mxu0 0.0
      %881 = vmatpush1.msra.mxu0 0.0
      %882 = vmatprep.subr.mxu0 0.0
      %883 = vmatpush1.msra.mxu0 0.0
      %884 = vmatprep.subr.mxu0 0.0
      %885 = vmatpush1.msra.mxu0 0.0
      %886 = vmatprep.subr.mxu0 0.0
      %887 = vmatpush1.msra.mxu0 0.0
      %888 = vmatprep.subr.mxu0 0.0
      %889 = vmatpush1.msra.mxu0 0.0
      %890 = vmatprep.subr.mxu0 0.0
      %891 = vmatpush1.msra.mxu0 0.0
      %892 = vmatprep.subr.mxu0 0.0
      %893 = vmatpush1.msra.mxu0 0.0
      %894 = vmatprep.mubr.f32.mxu0 0.0
      %895 = vmatmul.mubr.f32.gmra.mrb[0].mxu0 %v616
      %v896 = vpop.f32.mrb[0].mxu0
      %v897 = vadd.f32 %v489, %v896
      %v898 = vpop.f32.mrb[0].mxu0
      %899 = vmatprep.mubr.f32.mxu0 0.0
      %900 = vmatmul.mubr.f32.gmra.mrb[0].mxu0 %v619
      %v901 = vpop.f32.mrb[0].mxu0
      %v902 = vadd.f32 %v494, %v901
      %v903 = vpop.f32.mrb[0].mxu0
      %904 = vmatprep.mubr.f32.mxu0 0.0
      %905 = vmatmul.mubr.f32.gmra.mrb[0].mxu0 %v622
      %v906 = vpop.f32.mrb[0].mxu0
      %v907 = vadd.f32 %v499, %v906
      %v908 = vpop.f32.mrb[0].mxu0
      %909 = vmatprep.mubr.f32.mxu0 0.0
      %910 = vmatmul.mubr.f32.gmra.mrb[0].mxu0 %v625
      %v911 = vpop.f32.mrb[0].mxu0
      %v912 = vadd.f32 %v504, %v911
      %v913 = vpop.f32.mrb[0].mxu0
      %914 = vmatprep.mubr.f32.mxu0 0.0
      %915 = vmatmul.mubr.f32.gmra.mrb[0].mxu0 %v628
      %v916 = vpop.f32.mrb[0].mxu0
      %v917 = vadd.f32 %v509, %v916
      %v918 = vpop.f32.mrb[0].mxu0
      %919 = vmatprep.mubr.f32.mxu0 0.0
      %920 = vmatmul.mubr.f32.gmra.mrb[0].mxu0 %v631
      %v921 = vpop.f32.mrb[0].mxu0
      %v922 = vadd.f32 %v514, %v921
      %v923 = vpop.f32.mrb[0].mxu0
      %924 = vmatprep.mubr.f32.mxu0 0.0
      %925 = vmatmul.mubr.f32.gmra.mrb[0].mxu0 %v634
      %v926 = vpop.f32.mrb[0].mxu0
      %v927 = vadd.f32 %v519, %v926
      %v928 = vpop.f32.mrb[0].mxu0
      %929 = vmatprep.mubr.f32.mxu0 0.0
      %930 = vmatmul.mubr.f32.gmra.mrb[0].mxu0 %v637
      %v931 = vpop.f32.mrb[0].mxu0
      %v932 = vadd.f32 %v524, %v931
      %v933 = vpop.f32.mrb[0].mxu0
      %934 = vmatprep.mubr.f32.mxu0 0.0
      %935 = vmatmul.mubr.f32.gmra.mrb[0].mxu0 %v640
      %v936 = vpop.f32.mrb[0].mxu0
      %v937 = vadd.f32 %v529, %v936
      %v938 = vpop.f32.mrb[0].mxu0
      %939 = vmatprep.mubr.f32.mxu0 0.0
      %940 = vmatmul.mubr.f32.gmra.mrb[0].mxu0 %v643
      %v941 = vpop.f32.mrb[0].mxu0
      %v942 = vadd.f32 %v534, %v941
      %v943 = vpop.f32.mrb[0].mxu0
      %944 = vmatprep.mubr.f32.mxu0 0.0
      %945 = vmatmul.mubr.f32.gmra.mrb[0].mxu0 %v646
      %v946 = vpop.f32.mrb[0].mxu0
      %v947 = vadd.f32 %v539, %v946
      %v948 = vpop.f32.mrb[0].mxu0
      %949 = vmatprep.mubr.f32.mxu0 0.0
      %950 = vmatmul.mubr.f32.gmra.mrb[0].mxu0 %v649
      %v951 = vpop.f32.mrb[0].mxu0
      %v952 = vadd.f32 %v544, %v951
      %v953 = vpop.f32.mrb[0].mxu0
      %954 = vmatprep.mubr.f32.mxu0 0.0
      %955 = vmatmul.mubr.f32.gmra.mrb[0].mxu0 %v652
      %v956 = vpop.f32.mrb[0].mxu0
      %v957 = vadd.f32 %v549, %v956
      %v958 = vpop.f32.mrb[0].mxu0
      %959 = vmatprep.mubr.f32.mxu0 0.0
      %960 = vmatmul.mubr.f32.gmra.mrb[0].mxu0 %v655
      %v961 = vpop.f32.mrb[0].mxu0
      %v962 = vadd.f32 %v554, %v961
      %v963 = vpop.f32.mrb[0].mxu0
      %964 = vmatprep.mubr.f32.mxu0 0.0
      %965 = vmatmul.mubr.f32.gmra.mrb[0].mxu0 %v658
      %v966 = vpop.f32.mrb[0].mxu0
      %v967 = vadd.f32 %v559, %v966
      %v968 = vpop.f32.mrb[0].mxu0
      %969 = vmatprep.mubr.f32.mxu0 0.0
      %970 = vmatmul.mubr.f32.gmra.mrb[0].mxu0 %v661
      %v971 = vpop.f32.mrb[0].mxu0
      %v972 = vadd.f32 %v564, %v971
      %v973 = vpop.f32.mrb[0].mxu0
      %974 = vdwg.mxu0
      %v975 = vmax.f32 %v736, 0.0
      %v976 = vmax.f32 %v738, 0.0
      %v977 = vmax.f32 %v897, 0.0
      %v978 = vmax.f32 %v742, 0.0
      %v979 = vmax.f32 %v744, 0.0
      %v980 = vmax.f32 %v902, 0.0
      %v981 = vmax.f32 %v748, 0.0
      %v982 = vmax.f32 %v750, 0.0
      %v983 = vmax.f32 %v907, 0.0
      %v984 = vmax.f32 %v754, 0.0
      %v985 = vmax.f32 %v756, 0.0
      %v986 = vmax.f32 %v912, 0.0
      %v987 = vmax.f32 %v760, 0.0
      %v988 = vmax.f32 %v762, 0.0
      %v989 = vmax.f32 %v917, 0.0
      %v990 = vmax.f32 %v766, 0.0
      %v991 = vmax.f32 %v768, 0.0
      %v992 = vmax.f32 %v922, 0.0
      %v993 = vmax.f32 %v772, 0.0
      %v994 = vmax.f32 %v774, 0.0
      %v995 = vmax.f32 %v927, 0.0
      %v996 = vmax.f32 %v778, 0.0
      %v997 = vmax.f32 %v780, 0.0
      %v998 = vmax.f32 %v932, 0.0
      %v999 = vmax.f32 %v784, 0.0
      %v1000 = vmax.f32 %v786, 0.0
      %v1001 = vmax.f32 %v937, 0.0
      %v1002 = vmax.f32 %v790, 0.0
      %v1003 = vmax.f32 %v792, 0.0
      %v1004 = vmax.f32 %v942, 0.0
      %v1005 = vmax.f32 %v796, 0.0
      %v1006 = vmax.f32 %v798, 0.0
      %v1007 = vmax.f32 %v947, 0.0
      %v1008 = vmax.f32 %v802, 0.0
      %v1009 = vmax.f32 %v804, 0.0
      %v1010 = vmax.f32 %v952, 0.0
      %v1011 = vmax.f32 %v808, 0.0
      %v1012 = vmax.f32 %v810, 0.0
      %v1013 = vmax.f32 %v957, 0.0
      %v1014 = vmax.f32 %v814, 0.0
      %v1015 = vmax.f32 %v816, 0.0
      %v1016 = vmax.f32 %v962, 0.0
      %v1017 = vmax.f32 %v820, 0.0
      %v1018 = vmax.f32 %v822, 0.0
      %v1019 = vmax.f32 %v967, 0.0
      %v1020 = vmax.f32 %v826, 0.0
      %v1021 = vmax.f32 %v828, 0.0
      %v1022 = vmax.f32 %v972, 0.0
      %v1023 = vld [vmem:[%s3] sm:$0xff]
      %v1024 = vld [vmem:[%s3 + $0x8] sm:$0xff]
      %v1025 = vld [vmem:[%s3 + $0x10] sm:$0xff]
      %v1026 = vld [vmem:[%s3 + $0x18] sm:$0xff]
      %v1027 = vld [vmem:[%s3 + $0x20] sm:$0xff]
      %v1028 = vld [vmem:[%s3 + $0x28] sm:$0xff]
      %v1029 = vld [vmem:[%s3 + $0x30] sm:$0xff]
      %v1030 = vld [vmem:[%s3 + $0x38] sm:$0xff]
      %v1031 = vld [vmem:[%s3 + $0x40] sm:$0xff]
      %v1032 = vld [vmem:[%s3 + $0x48] sm:$0xff]
      %v1033 = vld [vmem:[%s3 + $0x50] sm:$0xff]
      %v1034 = vld [vmem:[%s3 + $0x58] sm:$0xff]
      %v1035 = vld [vmem:[%s3 + $0x60] sm:$0xff]
      %v1036 = vld [vmem:[%s3 + $0x68] sm:$0xff]
      %v1037 = vld [vmem:[%s3 + $0x70] sm:$0xff]
      %v1038 = vld [vmem:[%s3 + $0x78] sm:$0xff]
      %v1039 = vld [vmem:[%s3 + $0x80] sm:$0xff]
      %v1040 = vld [vmem:[%s3 + $0x88] sm:$0xff]
      %v1041 = vld [vmem:[%s3 + $0x90] sm:$0xff]
      %v1042 = vld [vmem:[%s3 + $0x98] sm:$0xff]
      %v1043 = vld [vmem:[%s3 + $0xa0] sm:$0xff]
      %v1044 = vld [vmem:[%s3 + $0xa8] sm:$0xff]
      %v1045 = vld [vmem:[%s3 + $0xb0] sm:$0xff]
      %v1046 = vld [vmem:[%s3 + $0xb8] sm:$0xff]
      %v1047 = vld [vmem:[%s3 + $0xc0] sm:$0xff]
      %v1048 = vld [vmem:[%s3 + $0xc8] sm:$0xff]
      %v1049 = vld [vmem:[%s3 + $0xd0] sm:$0xff]
      %v1050 = vld [vmem:[%s3 + $0xd8] sm:$0xff]
      %v1051 = vld [vmem:[%s3 + $0xe0] sm:$0xff]
      %v1052 = vld [vmem:[%s3 + $0xe8] sm:$0xff]
      %v1053 = vld [vmem:[%s3 + $0xf0] sm:$0xff]
      %v1054 = vld [vmem:[%s3 + $0xf8] sm:$0xff]
      %v1055 = vld [vmem:[%s3 + $0x100] sm:$0xff]
      %v1056 = vld [vmem:[%s3 + $0x108] sm:$0xff]
      %v1057 = vld [vmem:[%s3 + $0x110] sm:$0xff]
      %v1058 = vld [vmem:[%s3 + $0x118] sm:$0xff]
      %v1059 = vld [vmem:[%s3 + $0x120] sm:$0xff]
      %v1060 = vld [vmem:[%s3 + $0x128] sm:$0xff]
      %v1061 = vld [vmem:[%s3 + $0x130] sm:$0xff]
      %v1062 = vld [vmem:[%s3 + $0x138] sm:$0xff]
      %v1063 = vld [vmem:[%s3 + $0x140] sm:$0xff]
      %v1064 = vld [vmem:[%s3 + $0x148] sm:$0xff]
      %v1065 = vld [vmem:[%s3 + $0x150] sm:$0xff]
      %v1066 = vld [vmem:[%s3 + $0x158] sm:$0xff]
      %v1067 = vld [vmem:[%s3 + $0x160] sm:$0xff]
      %v1068 = vld [vmem:[%s3 + $0x168] sm:$0xff]
      %v1069 = vld [vmem:[%s3 + $0x170] sm:$0xff]
      %v1070 = vld [vmem:[%s3 + $0x178] sm:$0xff]
      %1071 = vmatprep.subr.mxu0 0.0
      %1072 = vmatpush1.msra.mxu0 %v1023
      %1073 = vmatprep.subr.mxu0 0.0
      %1074 = vmatpush1.msra.mxu0 %v1024
      %1075 = vmatprep.subr.mxu0 0.0
      %1076 = vmatpush1.msra.mxu0 %v1025
      %1077 = vmatprep.subr.mxu0 0.0
      %1078 = vmatpush1.msra.mxu0 %v1026
      %1079 = vmatprep.subr.mxu0 0.0
      %1080 = vmatpush1.msra.mxu0 %v1027
      %1081 = vmatprep.subr.mxu0 0.0
      %1082 = vmatpush1.msra.mxu0 %v1028
      %1083 = vmatprep.subr.mxu0 0.0
      %1084 = vmatpush1.msra.mxu0 %v1029
      %1085 = vmatprep.subr.mxu0 0.0
      %1086 = vmatpush1.msra.mxu0 %v1030
      %1087 = vmatprep.subr.mxu0 0.0
      %1088 = vmatpush1.msra.mxu0 %v1031
      %1089 = vmatprep.subr.mxu0 0.0
      %1090 = vmatpush1.msra.mxu0 %v1032
      %1091 = vmatprep.subr.mxu0 0.0
      %1092 = vmatpush1.msra.mxu0 %v1033
      %1093 = vmatprep.subr.mxu0 0.0
      %1094 = vmatpush1.msra.mxu0 %v1034
      %1095 = vmatprep.subr.mxu0 0.0
      %1096 = vmatpush1.msra.mxu0 %v1035
      %1097 = vmatprep.subr.mxu0 0.0
      %1098 = vmatpush1.msra.mxu0 %v1036
      %1099 = vmatprep.subr.mxu0 0.0
      %1100 = vmatpush1.msra.mxu0 %v1037
      %1101 = vmatprep.subr.mxu0 0.0
      %1102 = vmatpush1.msra.mxu0 %v1038
      %1103 = vmatprep.subr.mxu0 0.0
      %1104 = vmatpush1.msra.mxu0 %v1039
      %1105 = vmatprep.subr.mxu0 0.0
      %1106 = vmatpush1.msra.mxu0 %v1040
      %1107 = vmatprep.subr.mxu0 0.0
      %1108 = vmatpush1.msra.mxu0 %v1041
      %1109 = vmatprep.subr.mxu0 0.0
      %1110 = vmatpush1.msra.mxu0 %v1042
      %1111 = vmatprep.subr.mxu0 0.0
      %1112 = vmatpush1.msra.mxu0 %v1043
      %1113 = vmatprep.subr.mxu0 0.0
      %1114 = vmatpush1.msra.mxu0 %v1044
      %1115 = vmatprep.subr.mxu0 0.0
      %1116 = vmatpush1.msra.mxu0 %v1045
      %1117 = vmatprep.subr.mxu0 0.0
      %1118 = vmatpush1.msra.mxu0 %v1046
      %1119 = vmatprep.subr.mxu0 0.0
      %1120 = vmatpush1.msra.mxu0 %v1047
      %1121 = vmatprep.subr.mxu0 0.0
      %1122 = vmatpush1.msra.mxu0 %v1048
      %1123 = vmatprep.subr.mxu0 0.0
      %1124 = vmatpush1.msra.mxu0 %v1049
      %1125 = vmatprep.subr.mxu0 0.0
      %1126 = vmatpush1.msra.mxu0 %v1050
      %1127 = vmatprep.subr.mxu0 0.0
      %1128 = vmatpush1.msra.mxu0 %v1051
      %1129 = vmatprep.subr.mxu0 0.0
      %1130 = vmatpush1.msra.mxu0 %v1052
      %1131 = vmatprep.subr.mxu0 0.0
      %1132 = vmatpush1.msra.mxu0 %v1053
      %1133 = vmatprep.subr.mxu0 0.0
      %1134 = vmatpush1.msra.mxu0 %v1054
      %1135 = vmatprep.mubr.f32.mxu0 %v976
      %1136 = vmatmul.mubr.f32.gmra.mrb[0].mxu0 %v975
      %v1137 = vpop.f32.mrb[0].mxu0
      %v1138 = vadd.f32 0.0, %v1137
      %v1139 = vpop.f32.mrb[0].mxu0
      %1140 = vmatprep.mubr.f32.mxu0 %v979
      %1141 = vmatmul.mubr.f32.gmra.mrb[0].mxu0 %v978
      %v1142 = vpop.f32.mrb[0].mxu0
      %v1143 = vadd.f32 0.0, %v1142
      %v1144 = vpop.f32.mrb[0].mxu0
      %1145 = vmatprep.mubr.f32.mxu0 %v982
      %1146 = vmatmul.mubr.f32.gmra.mrb[0].mxu0 %v981
      %v1147 = vpop.f32.mrb[0].mxu0
      %v1148 = vadd.f32 0.0, %v1147
      %v1149 = vpop.f32.mrb[0].mxu0
      %1150 = vmatprep.mubr.f32.mxu0 %v985
      %1151 = vmatmul.mubr.f32.gmra.mrb[0].mxu0 %v984
      %v1152 = vpop.f32.mrb[0].mxu0
      %v1153 = vadd.f32 0.0, %v1152
      %v1154 = vpop.f32.mrb[0].mxu0
      %1155 = vmatprep.mubr.f32.mxu0 %v988
      %1156 = vmatmul.mubr.f32.gmra.mrb[0].mxu0 %v987
      %v1157 = vpop.f32.mrb[0].mxu0
      %v1158 = vadd.f32 0.0, %v1157
      %v1159 = vpop.f32.mrb[0].mxu0
      %1160 = vmatprep.mubr.f32.mxu0 %v991
      %1161 = vmatmul.mubr.f32.gmra.mrb[0].mxu0 %v990
      %v1162 = vpop.f32.mrb[0].mxu0
      %v1163 = vadd.f32 0.0, %v1162
      %v1164 = vpop.f32.mrb[0].mxu0
      %1165 = vmatprep.mubr.f32.mxu0 %v994
      %1166 = vmatmul.mubr.f32.gmra.mrb[0].mxu0 %v993
      %v1167 = vpop.f32.mrb[0].mxu0
      %v1168 = vadd.f32 0.0, %v1167
      %v1169 = vpop.f32.mrb[0].mxu0
      %1170 = vmatprep.mubr.f32.mxu0 %v997
      %1171 = vmatmul.mubr.f32.gmra.mrb[0].mxu0 %v996
      %v1172 = vpop.f32.mrb[0].mxu0
      %v1173 = vadd.f32 0.0, %v1172
      %v1174 = vpop.f32.mrb[0].mxu0
      %1175 = vmatprep.mubr.f32.mxu0 %v1000
      %1176 = vmatmul.mubr.f32.gmra.mrb[0].mxu0 %v999
      %v1177 = vpop.f32.mrb[0].mxu0
      %v1178 = vadd.f32 0.0, %v1177
      %v1179 = vpop.f32.mrb[0].mxu0
      %1180 = vmatprep.mubr.f32.mxu0 %v1003
      %1181 = vmatmul.mubr.f32.gmra.mrb[0].mxu0 %v1002
      %v1182 = vpop.f32.mrb[0].mxu0
      %v1183 = vadd.f32 0.0, %v1182
      %v1184 = vpop.f32.mrb[0].mxu0
      %1185 = vmatprep.mubr.f32.mxu0 %v1006
      %1186 = vmatmul.mubr.f32.gmra.mrb[0].mxu0 %v1005
      %v1187 = vpop.f32.mrb[0].mxu0
      %v1188 = vadd.f32 0.0, %v1187
      %v1189 = vpop.f32.mrb[0].mxu0
      %1190 = vmatprep.mubr.f32.mxu0 %v1009
      %1191 = vmatmul.mubr.f32.gmra.mrb[0].mxu0 %v1008
      %v1192 = vpop.f32.mrb[0].mxu0
      %v1193 = vadd.f32 0.0, %v1192
      %v1194 = vpop.f32.mrb[0].mxu0
      %1195 = vmatprep.mubr.f32.mxu0 %v1012
      %1196 = vmatmul.mubr.f32.gmra.mrb[0].mxu0 %v1011
      %v1197 = vpop.f32.mrb[0].mxu0
      %v1198 = vadd.f32 0.0, %v1197
      %v1199 = vpop.f32.mrb[0].mxu0
      %1200 = vmatprep.mubr.f32.mxu0 %v1015
      %1201 = vmatmul.mubr.f32.gmra.mrb[0].mxu0 %v1014
      %v1202 = vpop.f32.mrb[0].mxu0
      %v1203 = vadd.f32 0.0, %v1202
      %v1204 = vpop.f32.mrb[0].mxu0
      %1205 = vmatprep.mubr.f32.mxu0 %v1018
      %1206 = vmatmul.mubr.f32.gmra.mrb[0].mxu0 %v1017
      %v1207 = vpop.f32.mrb[0].mxu0
      %v1208 = vadd.f32 0.0, %v1207
      %v1209 = vpop.f32.mrb[0].mxu0
      %1210 = vmatprep.mubr.f32.mxu0 %v1021
      %1211 = vmatmul.mubr.f32.gmra.mrb[0].mxu0 %v1020
      %v1212 = vpop.f32.mrb[0].mxu0
      %v1213 = vadd.f32 0.0, %v1212
      %v1214 = vpop.f32.mrb[0].mxu0
      %1215 = vdwg.mxu0
      %1216 = vmatprep.subr.mxu0 0.0
      %1217 = vmatpush1.msra.mxu0 %v1055
      %1218 = vmatprep.subr.mxu0 0.0
      %1219 = vmatpush1.msra.mxu0 %v1056
      %1220 = vmatprep.subr.mxu0 0.0
      %1221 = vmatpush1.msra.mxu0 %v1057
      %1222 = vmatprep.subr.mxu0 0.0
      %1223 = vmatpush1.msra.mxu0 %v1058
      %1224 = vmatprep.subr.mxu0 0.0
      %1225 = vmatpush1.msra.mxu0 %v1059
      %1226 = vmatprep.subr.mxu0 0.0
      %1227 = vmatpush1.msra.mxu0 %v1060
      %1228 = vmatprep.subr.mxu0 0.0
      %1229 = vmatpush1.msra.mxu0 %v1061
      %1230 = vmatprep.subr.mxu0 0.0
      %1231 = vmatpush1.msra.mxu0 %v1062
      %1232 = vmatprep.subr.mxu0 0.0
      %1233 = vmatpush1.msra.mxu0 %v1063
      %1234 = vmatprep.subr.mxu0 0.0
      %1235 = vmatpush1.msra.mxu0 %v1064
      %1236 = vmatprep.subr.mxu0 0.0
      %1237 = vmatpush1.msra.mxu0 %v1065
      %1238 = vmatprep.subr.mxu0 0.0
      %1239 = vmatpush1.msra.mxu0 %v1066
      %1240 = vmatprep.subr.mxu0 0.0
      %1241 = vmatpush1.msra.mxu0 %v1067
      %1242 = vmatprep.subr.mxu0 0.0
      %1243 = vmatpush1.msra.mxu0 %v1068
      %1244 = vmatprep.subr.mxu0 0.0
      %1245 = vmatpush1.msra.mxu0 %v1069
      %1246 = vmatprep.subr.mxu0 0.0
      %1247 = vmatpush1.msra.mxu0 %v1070
      %1248 = vmatprep.subr.mxu0 0.0
      %1249 = vmatpush1.msra.mxu0 0.0
      %1250 = vmatprep.subr.mxu0 0.0
      %1251 = vmatpush1.msra.mxu0 0.0
      %1252 = vmatprep.subr.mxu0 0.0
      %1253 = vmatpush1.msra.mxu0 0.0
      %1254 = vmatprep.subr.mxu0 0.0
      %1255 = vmatpush1.msra.mxu0 0.0
      %1256 = vmatprep.subr.mxu0 0.0
      %1257 = vmatpush1.msra.mxu0 0.0
      %1258 = vmatprep.subr.mxu0 0.0
      %1259 = vmatpush1.msra.mxu0 0.0
      %1260 = vmatprep.subr.mxu0 0.0
      %1261 = vmatpush1.msra.mxu0 0.0
      %1262 = vmatprep.subr.mxu0 0.0
      %1263 = vmatpush1.msra.mxu0 0.0
      %1264 = vmatprep.subr.mxu0 0.0
      %1265 = vmatpush1.msra.mxu0 0.0
      %1266 = vmatprep.subr.mxu0 0.0
      %1267 = vmatpush1.msra.mxu0 0.0
      %1268 = vmatprep.subr.mxu0 0.0
      %1269 = vmatpush1.msra.mxu0 0.0
      %1270 = vmatprep.subr.mxu0 0.0
      %1271 = vmatpush1.msra.mxu0 0.0
      %1272 = vmatprep.subr.mxu0 0.0
      %1273 = vmatpush1.msra.mxu0 0.0
      %1274 = vmatprep.subr.mxu0 0.0
      %1275 = vmatpush1.msra.mxu0 0.0
      %1276 = vmatprep.subr.mxu0 0.0
      %1277 = vmatpush1.msra.mxu0 0.0
      %1278 = vmatprep.subr.mxu0 0.0
      %1279 = vmatpush1.msra.mxu0 0.0
      %1280 = vmatprep.mubr.f32.mxu0 0.0
      %1281 = vmatmul.mubr.f32.gmra.mrb[0].mxu0 %v977
      %v1282 = vpop.f32.mrb[0].mxu0
      %v1283 = vadd.f32 %v1138, %v1282
      %v1284 = vpop.f32.mrb[0].mxu0
      %1285 = vmatprep.mubr.f32.mxu0 0.0
      %1286 = vmatmul.mubr.f32.gmra.mrb[0].mxu0 %v980
      %v1287 = vpop.f32.mrb[0].mxu0
      %v1288 = vadd.f32 %v1143, %v1287
      %v1289 = vpop.f32.mrb[0].mxu0
      %1290 = vmatprep.mubr.f32.mxu0 0.0
      %1291 = vmatmul.mubr.f32.gmra.mrb[0].mxu0 %v983
      %v1292 = vpop.f32.mrb[0].mxu0
      %v1293 = vadd.f32 %v1148, %v1292
      %v1294 = vpop.f32.mrb[0].mxu0
      %1295 = vmatprep.mubr.f32.mxu0 0.0
      %1296 = vmatmul.mubr.f32.gmra.mrb[0].mxu0 %v986
      %v1297 = vpop.f32.mrb[0].mxu0
      %v1298 = vadd.f32 %v1153, %v1297
      %v1299 = vpop.f32.mrb[0].mxu0
      %1300 = vmatprep.mubr.f32.mxu0 0.0
      %1301 = vmatmul.mubr.f32.gmra.mrb[0].mxu0 %v989
      %v1302 = vpop.f32.mrb[0].mxu0
      %v1303 = vadd.f32 %v1158, %v1302
      %v1304 = vpop.f32.mrb[0].mxu0
      %1305 = vmatprep.mubr.f32.mxu0 0.0
      %1306 = vmatmul.mubr.f32.gmra.mrb[0].mxu0 %v992
      %v1307 = vpop.f32.mrb[0].mxu0
      %v1308 = vadd.f32 %v1163, %v1307
      %v1309 = vpop.f32.mrb[0].mxu0
      %1310 = vmatprep.mubr.f32.mxu0 0.0
      %1311 = vmatmul.mubr.f32.gmra.mrb[0].mxu0 %v995
      %v1312 = vpop.f32.mrb[0].mxu0
      %v1313 = vadd.f32 %v1168, %v1312
      %v1314 = vpop.f32.mrb[0].mxu0
      %1315 = vmatprep.mubr.f32.mxu0 0.0
      %1316 = vmatmul.mubr.f32.gmra.mrb[0].mxu0 %v998
      %v1317 = vpop.f32.mrb[0].mxu0
      %v1318 = vadd.f32 %v1173, %v1317
      %v1319 = vpop.f32.mrb[0].mxu0
      %1320 = vmatprep.mubr.f32.mxu0 0.0
      %1321 = vmatmul.mubr.f32.gmra.mrb[0].mxu0 %v1001
      %v1322 = vpop.f32.mrb[0].mxu0
      %v1323 = vadd.f32 %v1178, %v1322
      %v1324 = vpop.f32.mrb[0].mxu0
      %1325 = vmatprep.mubr.f32.mxu0 0.0
      %1326 = vmatmul.mubr.f32.gmra.mrb[0].mxu0 %v1004
      %v1327 = vpop.f32.mrb[0].mxu0
      %v1328 = vadd.f32 %v1183, %v1327
      %v1329 = vpop.f32.mrb[0].mxu0
      %1330 = vmatprep.mubr.f32.mxu0 0.0
      %1331 = vmatmul.mubr.f32.gmra.mrb[0].mxu0 %v1007
      %v1332 = vpop.f32.mrb[0].mxu0
      %v1333 = vadd.f32 %v1188, %v1332
      %v1334 = vpop.f32.mrb[0].mxu0
      %1335 = vmatprep.mubr.f32.mxu0 0.0
      %1336 = vmatmul.mubr.f32.gmra.mrb[0].mxu0 %v1010
      %v1337 = vpop.f32.mrb[0].mxu0
      %v1338 = vadd.f32 %v1193, %v1337
      %v1339 = vpop.f32.mrb[0].mxu0
      %1340 = vmatprep.mubr.f32.mxu0 0.0
      %1341 = vmatmul.mubr.f32.gmra.mrb[0].mxu0 %v1013
      %v1342 = vpop.f32.mrb[0].mxu0
      %v1343 = vadd.f32 %v1198, %v1342
      %v1344 = vpop.f32.mrb[0].mxu0
      %1345 = vmatprep.mubr.f32.mxu0 0.0
      %1346 = vmatmul.mubr.f32.gmra.mrb[0].mxu0 %v1016
      %v1347 = vpop.f32.mrb[0].mxu0
      %v1348 = vadd.f32 %v1203, %v1347
      %v1349 = vpop.f32.mrb[0].mxu0
      %1350 = vmatprep.mubr.f32.mxu0 0.0
      %1351 = vmatmul.mubr.f32.gmra.mrb[0].mxu0 %v1019
      %v1352 = vpop.f32.mrb[0].mxu0
      %v1353 = vadd.f32 %v1208, %v1352
      %v1354 = vpop.f32.mrb[0].mxu0
      %1355 = vmatprep.mubr.f32.mxu0 0.0
      %1356 = vmatmul.mubr.f32.gmra.mrb[0].mxu0 %v1022
      %v1357 = vpop.f32.mrb[0].mxu0
      %v1358 = vadd.f32 %v1213, %v1357
      %v1359 = vpop.f32.mrb[0].mxu0
      %1360 = vdwg.mxu0
      %v1361 = vld [vmem:[%s4] sm:$0xff]
      %v1362 = vld [vmem:[%s4 + $0x8] sm:$0xff]
      %v1363 = vld [vmem:[%s4 + $0x10] sm:$0xff]
      %v1364 = vld [vmem:[%s4 + $0x18] sm:$0xff]
      %v1365 = vld [vmem:[%s4 + $0x20] sm:$0xff]
      %v1366 = vld [vmem:[%s4 + $0x28] sm:$0xff]
      %v1367 = vld [vmem:[%s4 + $0x30] sm:$0xff]
      %v1368 = vld [vmem:[%s4 + $0x38] sm:$0xff]
      %v1369 = vld [vmem:[%s4 + $0x40] sm:$0xff]
      %v1370 = vld [vmem:[%s4 + $0x48] sm:$0xff]
      %v1371 = vld [vmem:[%s4 + $0x50] sm:$0xff]
      %v1372 = vld [vmem:[%s4 + $0x58] sm:$0xff]
      %v1373 = vld [vmem:[%s4 + $0x60] sm:$0xff]
      %v1374 = vld [vmem:[%s4 + $0x68] sm:$0xff]
      %v1375 = vld [vmem:[%s4 + $0x70] sm:$0xff]
      %v1376 = vld [vmem:[%s4 + $0x78] sm:$0xff]
      %v1377 = vld [vmem:[%s5] sm:$0xff]
      %v1378 = vld [vmem:[%s5 + $0x8] sm:$0xff]
      %v1379 = vld [vmem:[%s5 + $0x10] sm:$0xff]
      %v1380 = vld [vmem:[%s5 + $0x18] sm:$0xff]
      %v1381 = vld [vmem:[%s5 + $0x20] sm:$0xff]
      %v1382 = vld [vmem:[%s5 + $0x28] sm:$0xff]
      %v1383 = vld [vmem:[%s5 + $0x30] sm:$0xff]
      %v1384 = vld [vmem:[%s5 + $0x38] sm:$0xff]
      %v1385 = vld [vmem:[%s5 + $0x40] sm:$0xff]
      %v1386 = vld [vmem:[%s5 + $0x48] sm:$0xff]
      %v1387 = vld [vmem:[%s5 + $0x50] sm:$0xff]
      %v1388 = vld [vmem:[%s5 + $0x58] sm:$0xff]
      %v1389 = vld [vmem:[%s5 + $0x60] sm:$0xff]
      %v1390 = vld [vmem:[%s5 + $0x68] sm:$0xff]
      %v1391 = vld [vmem:[%s5 + $0x70] sm:$0xff]
      %v1392 = vld [vmem:[%s5 + $0x78] sm:$0xff]
      %1393 = vmatprep.subr.mxu0 0.0
      %1394 = vmatpush1.msra.mxu0 %v1283
      %1395 = vmatprep.subr.mxu0 0.0
      %1396 = vmatpush1.msra.mxu0 %v1288
      %1397 = vmatprep.subr.mxu0 0.0
      %1398 = vmatpush1.msra.mxu0 %v1293
      %1399 = vmatprep.subr.mxu0 0.0
      %1400 = vmatpush1.msra.mxu0 %v1298
      %1401 = vmatprep.subr.mxu0 0.0
      %1402 = vmatpush1.msra.mxu0 %v1303
      %1403 = vmatprep.subr.mxu0 0.0
      %1404 = vmatpush1.msra.mxu0 %v1308
      %1405 = vmatprep.subr.mxu0 0.0
      %1406 = vmatpush1.msra.mxu0 %v1313
      %1407 = vmatprep.subr.mxu0 0.0
      %1408 = vmatpush1.msra.mxu0 %v1318
      %1409 = vmatprep.subr.mxu0 0.0
      %1410 = vmatpush1.msra.mxu0 %v1323
      %1411 = vmatprep.subr.mxu0 0.0
      %1412 = vmatpush1.msra.mxu0 %v1328
      %1413 = vmatprep.subr.mxu0 0.0
      %1414 = vmatpush1.msra.mxu0 %v1333
      %1415 = vmatprep.subr.mxu0 0.0
      %1416 = vmatpush1.msra.mxu0 %v1338
      %1417 = vmatprep.subr.mxu0 0.0
      %1418 = vmatpush1.msra.mxu0 %v1343
      %1419 = vmatprep.subr.mxu0 0.0
      %1420 = vmatpush1.msra.mxu0 %v1348
      %1421 = vmatprep.subr.mxu0 0.0
      %1422 = vmatpush1.msra.mxu0 %v1353
      %1423 = vmatprep.subr.mxu0 0.0
      %1424 = vmatpush1.msra.mxu0 %v1358
      %1425 = vmatprep.subr.mxu0 0.0
      %1426 = vmatpush1.msra.mxu0 0.0
      %1427 = vmatprep.subr.mxu0 0.0
      %1428 = vmatpush1.msra.mxu0 0.0
      %1429 = vmatprep.subr.mxu0 0.0
      %1430 = vmatpush1.msra.mxu0 0.0
      %1431 = vmatprep.subr.mxu0 0.0
      %1432 = vmatpush1.msra.mxu0 0.0
      %1433 = vmatprep.subr.mxu0 0.0
      %1434 = vmatpush1.msra.mxu0 0.0
      %1435 = vmatprep.subr.mxu0 0.0
      %1436 = vmatpush1.msra.mxu0 0.0
      %1437 = vmatprep.subr.mxu0 0.0
      %1438 = vmatpush1.msra.mxu0 0.0
      %1439 = vmatprep.subr.mxu0 0.0
      %1440 = vmatpush1.msra.mxu0 0.0
      %1441 = vmatprep.subr.mxu0 0.0
      %1442 = vmatpush1.msra.mxu0 0.0
      %1443 = vmatprep.subr.mxu0 0.0
      %1444 = vmatpush1.msra.mxu0 0.0
      %1445 = vmatprep.subr.mxu0 0.0
      %1446 = vmatpush1.msra.mxu0 0.0
      %1447 = vmatprep.subr.mxu0 0.0
      %1448 = vmatpush1.msra.mxu0 0.0
      %1449 = vmatprep.subr.mxu0 0.0
      %1450 = vmatpush1.msra.mxu0 0.0
      %1451 = vmatprep.subr.mxu0 0.0
      %1452 = vmatpush1.msra.mxu0 0.0
      %1453 = vmatprep.subr.mxu0 0.0
      %1454 = vmatpush1.msra.mxu0 0.0
      %1455 = vmatprep.subr.mxu0 0.0
      %1456 = vmatpush1.msra.mxu0 0.0
      %1457 = vmatprep.mubr.f32.mxu0 0.0
      %1458 = vmatmul.mubr.f32.gmra.mrb[0].mxu0 %v1361
      %v1459 = vpop.f32.mrb[0].mxu0
      %v1460 = vadd.f32 %v1377, %v1459
      %v1461 = vpop.f32.mrb[0].mxu0
      %1462 = vmatprep.mubr.f32.mxu0 0.0
      %1463 = vmatmul.mubr.f32.gmra.mrb[0].mxu0 %v1362
      %v1464 = vpop.f32.mrb[0].mxu0
      %v1465 = vadd.f32 %v1378, %v1464
      %v1466 = vpop.f32.mrb[0].mxu0
      %1467 = vmatprep.mubr.f32.mxu0 0.0
      %1468 = vmatmul.mubr.f32.gmra.mrb[0].mxu0 %v1363
      %v1469 = vpop.f32.mrb[0].mxu0
      %v1470 = vadd.f32 %v1379, %v1469
      %v1471 = vpop.f32.mrb[0].mxu0
      %1472 = vmatprep.mubr.f32.mxu0 0.0
      %1473 = vmatmul.mubr.f32.gmra.mrb[0].mxu0 %v1364
      %v1474 = vpop.f32.mrb[0].mxu0
      %v1475 = vadd.f32 %v1380, %v1474
      %v1476 = vpop.f32.mrb[0].mxu0
      %1477 = vmatprep.mubr.f32.mxu0 0.0
      %1478 = vmatmul.mubr.f32.gmra.mrb[0].mxu0 %v1365
      %v1479 = vpop.f32.mrb[0].mxu0
      %v1480 = vadd.f32 %v1381, %v1479
      %v1481 = vpop.f32.mrb[0].mxu0
      %1482 = vmatprep.mubr.f32.mxu0 0.0
      %1483 = vmatmul.mubr.f32.gmra.mrb[0].mxu0 %v1366
      %v1484 = vpop.f32.mrb[0].mxu0
      %v1485 = vadd.f32 %v1382, %v1484
      %v1486 = vpop.f32.mrb[0].mxu0
      %1487 = vmatprep.mubr.f32.mxu0 0.0
      %1488 = vmatmul.mubr.f32.gmra.mrb[0].mxu0 %v1367
      %v1489 = vpop.f32.mrb[0].mxu0
      %v1490 = vadd.f32 %v1383, %v1489
      %v1491 = vpop.f32.mrb[0].mxu0
      %1492 = vmatprep.mubr.f32.mxu0 0.0
      %1493 = vmatmul.mubr.f32.gmra.mrb[0].mxu0 %v1368
      %v1494 = vpop.f32.mrb[0].mxu0
      %v1495 = vadd.f32 %v1384, %v1494
      %v1496 = vpop.f32.mrb[0].mxu0
      %1497 = vmatprep.mubr.f32.mxu0 0.0
      %1498 = vmatmul.mubr.f32.gmra.mrb[0].mxu0 %v1369
      %v1499 = vpop.f32.mrb[0].mxu0
      %v1500 = vadd.f32 %v1385, %v1499
      %v1501 = vpop.f32.mrb[0].mxu0
      %1502 = vmatprep.mubr.f32.mxu0 0.0
      %1503 = vmatmul.mubr.f32.gmra.mrb[0].mxu0 %v1370
      %v1504 = vpop.f32.mrb[0].mxu0
      %v1505 = vadd.f32 %v1386, %v1504
      %v1506 = vpop.f32.mrb[0].mxu0
      %1507 = vmatprep.mubr.f32.mxu0 0.0
      %1508 = vmatmul.mubr.f32.gmra.mrb[0].mxu0 %v1371
      %v1509 = vpop.f32.mrb[0].mxu0
      %v1510 = vadd.f32 %v1387, %v1509
      %v1511 = vpop.f32.mrb[0].mxu0
      %1512 = vmatprep.mubr.f32.mxu0 0.0
      %1513 = vmatmul.mubr.f32.gmra.mrb[0].mxu0 %v1372
      %v1514 = vpop.f32.mrb[0].mxu0
      %v1515 = vadd.f32 %v1388, %v1514
      %v1516 = vpop.f32.mrb[0].mxu0
      %1517 = vmatprep.mubr.f32.mxu0 0.0
      %1518 = vmatmul.mubr.f32.gmra.mrb[0].mxu0 %v1373
      %v1519 = vpop.f32.mrb[0].mxu0
      %v1520 = vadd.f32 %v1389, %v1519
      %v1521 = vpop.f32.mrb[0].mxu0
      %1522 = vmatprep.mubr.f32.mxu0 0.0
      %1523 = vmatmul.mubr.f32.gmra.mrb[0].mxu0 %v1374
      %v1524 = vpop.f32.mrb[0].mxu0
      %v1525 = vadd.f32 %v1390, %v1524
      %v1526 = vpop.f32.mrb[0].mxu0
      %1527 = vmatprep.mubr.f32.mxu0 0.0
      %1528 = vmatmul.mubr.f32.gmra.mrb[0].mxu0 %v1375
      %v1529 = vpop.f32.mrb[0].mxu0
      %v1530 = vadd.f32 %v1391, %v1529
      %v1531 = vpop.f32.mrb[0].mxu0
      %1532 = vmatprep.mubr.f32.mxu0 0.0
      %1533 = vmatmul.mubr.f32.gmra.mrb[0].mxu0 %v1376
      %v1534 = vpop.f32.mrb[0].mxu0
      %v1535 = vadd.f32 %v1392, %v1534
      %v1536 = vpop.f32.mrb[0].mxu0
      %1537 = vdwg.mxu0
      %vm1538 = vcmask 7168
      %1539 = vst.msk [vmem:[%s251] sm:$0xff] %vm1538, %v1460
      %1540 = vst.msk [vmem:[%s251 + $0x8] sm:$0xff] %vm1538, %v1465
      %1541 = vst.msk [vmem:[%s251 + $0x10] sm:$0xff] %vm1538, %v1470
      %1542 = vst.msk [vmem:[%s251 + $0x18] sm:$0xff] %vm1538, %v1475
      %1543 = vst.msk [vmem:[%s251 + $0x20] sm:$0xff] %vm1538, %v1480
      %1544 = vst.msk [vmem:[%s251 + $0x28] sm:$0xff] %vm1538, %v1485
      %1545 = vst.msk [vmem:[%s251 + $0x30] sm:$0xff] %vm1538, %v1490
      %1546 = vst.msk [vmem:[%s251 + $0x38] sm:$0xff] %vm1538, %v1495
      %1547 = vst.msk [vmem:[%s251 + $0x40] sm:$0xff] %vm1538, %v1500
      %1548 = vst.msk [vmem:[%s251 + $0x48] sm:$0xff] %vm1538, %v1505
      %1549 = vst.msk [vmem:[%s251 + $0x50] sm:$0xff] %vm1538, %v1510
      %1550 = vst.msk [vmem:[%s251 + $0x58] sm:$0xff] %vm1538, %v1515
      %1551 = vst.msk [vmem:[%s251 + $0x60] sm:$0xff] %vm1538, %v1520
      %1552 = vst.msk [vmem:[%s251 + $0x68] sm:$0xff] %vm1538, %v1525
      %1553 = vst.msk [vmem:[%s251 + $0x70] sm:$0xff] %vm1538, %v1530
      %1554 = vst.msk [vmem:[%s251 + $0x78] sm:$0xff] %vm1538, %v1535
      %p1555 = scmp.lt.s32.totalorder %s17, 1
      %s1556 = scalar_select %p1555, %s17, 1
      %s1557 = smul.addr %s1556, 16
      %s1558 = smul.addr %s1557, 8
      %s1559 = scalar_lea.vmem %s6, %s1558
      // Predicated region
      $region45: #{tpu_custom_call.1} parent=43 // pred_check
        %p1560 = pneg %p166
      $region46: #{tpu_custom_call.1} parent=43 // pred_check_branch
        %1562 = sbr.rel (%p1560) target = $region48
      $region47: #{tpu_custom_call.1} parent=43 // pred_region
        _
      $region48: #{tpu_custom_call.1} parent=43 // pred_fallthru
        _
    $region44: #{tpu_custom_call.1} parent=5 // pred_fallthru
      _
    %p1563 = scmp.le.s32.totalorder 2, %s12
    // Predicated region
    $region49: #{tpu_custom_call.1} parent=5 // pred_check
      %p1564 = pneg %p1563
    $region50: #{tpu_custom_call.1} parent=5 // pred_check_branch
      %1566 = sbr.rel (%p1564) target = $region52
    $region51: #{tpu_custom_call.1} parent=5 // pred_region
      %s1567 = ssub.s32 %s12, 2
      // Predicated region
      $region53: #{tpu_custom_call.1} parent=51 // pred_check
        %p1568 = pneg %p172
      $region54: #{tpu_custom_call.1} parent=51 // pred_check_branch
        %1570 = sbr.rel (%p1568) target = $region56
      $region55: #{tpu_custom_call.1} parent=51 // pred_region
        %p1571 = scmp.lt.s32.totalorder %s18, 1
        %s1572 = scalar_select %p1571, %s18, 1
        %s1573 = smul.addr %s1572, 16
        %s1574 = smul.addr %s1573, 8
        %s1575 = scalar_lea.vmem %s6, %s1574
      $region56: #{tpu_custom_call.1} parent=51 // pred_fallthru
        _
    $region52: #{tpu_custom_call.1} parent=5 // pred_fallthru
      _
  $region6: #{tpu_custom_call.1} parent=0 // loop_footer
    %s16 = sadd.s32 1, %s12
  $region7: #{tpu_custom_call.1} parent=0 // loop_footer_branch
    %11 = sbr.rel target = $region3
  $region8: #{tpu_custom_call.1} parent=0 // loop_exit
    _

</llo_original>
